<compile_context>
chip_gen: v5e
topology: v5e:2x2
jax: 0.10.0
libtpu: 0.0.40
codegen_flags: <defaults>
</compile_context>

<pallas_src>
import functools

import jax
import jax.numpy as jnp
import numpy as np
from jax import lax
from jax.experimental import pallas as pl
from jax.experimental.pallas import tpu as pltpu

_PHASES = ((0, 0), (0, 1), (1, 0), (1, 1))   # (output row parity r, col parity s)


def _conv_stats_kernel(xp_ref, w_ref, y_ref, sums_ref):
    # xp_ref  : (1, Cin, H+2, W+2) bf16   pad-1 input, NCHW (W on lanes)
    # w_ref   : (4, Cout, 4*Cin)   bf16   per-phase fused tap weights (pre-transposed)
    # y_ref   : (1, 4, Cout, H*W)  f32    conv output, phase-separated, lane-dense
    # sums_ref: (2, Cout)          f32    running [sum, sumsq] accumulated over N
    _, cin, hp, wp = xp_ref.shape
    _, _, cout, hw = y_ref.shape
    h, w = hp - 2, wp - 2

    @pl.when(pl.program_id(0) == 0)
    def _init():
        sums_ref[...] = jnp.zeros_like(sums_ref)

    x = xp_ref[0]                                                    # (Cin, H+2, W+2)
    s = jnp.zeros((cout,), jnp.float32)
    ss = jnp.zeros((cout,), jnp.float32)
    for p, (r, c) in enumerate(_PHASES):
        # Patch operand for this phase: 4 shifted views stacked along K -> (4*Cin, H*W).
        taps = []
        for dh in range(2):
            for dw in range(2):
                sl = x[:, r + dh:r + dh + h, c + dw:c + dw + w]      # (Cin, H, W)
                taps.append(sl.reshape(cin, hw))
        patch = jnp.concatenate(taps, axis=0)                        # (4*Cin, H*W) bf16
        # One K=4*Cin MXU matmul per phase; spatial (H*W) lands on lanes (dense stores).
        acc = jnp.dot(w_ref[p], patch, preferred_element_type=jnp.float32)  # (Cout, H*W)
        y_ref[0, p] = acc
        s = s + jnp.sum(acc, axis=-1)
        ss = ss + jnp.sum(acc * acc, axis=-1)
    sums_ref[0, :] = sums_ref[0, :] + s
    sums_ref[1, :] = sums_ref[1, :] + ss


def _bn_dropout_relu_kernel(*refs, apply_dropout: bool):
    # Folded BN affine (y*scale + shift) + Dropout(0.5) + ReLU fused into one select.
    if apply_dropout:
        y_ref, scale_ref, shift_ref, bits_ref, o_ref = refs
    else:
        y_ref, scale_ref, shift_ref, o_ref = refs

    z = y_ref[0] * scale_ref[...][None] + shift_ref[...][None]       # (4, Cout, H*W)
    if apply_dropout:
        keep = bits_ref[0] < jnp.uint32(1 << 31)                     # P(keep) = 0.5
        z = jnp.where(jnp.logical_and(keep, z > 0), z * 2.0, 0.0)    # dropout+ReLU fused
    else:
        z = jnp.maximum(z, 0.0)
    o_ref[0] = z


def upsample_block(x, weight, gamma, beta, seed, *, apply_dropout=True, eps=1e-5):
    """x: (N, Cin, H, W) NCHW; weight: (Cin, Cout, 4, 4) (PyTorch ConvTranspose2d layout)."""
    n, cin, h, w = x.shape
    cout = weight.shape[1]
    ho, wo, hw = 2 * h, 2 * w, h * w

    # Cheap prep: pad-1 input stays NCHW (no transpose, no zero-dilated buffer); fold the
    # 4 taps of each output phase into one (Cout, 4*Cin) matrix for a single K=4*Cin matmul.
    xp = jnp.pad(x, ((0, 0), (0, 0), (1, 1), (1, 1))).astype(jnp.bfloat16)
    w_phases = []
    for (r, c) in _PHASES:
        taps = []
        for dh in range(2):
            for dw in range(2):
                kh, kw = 3 - r - 2 * dh, 3 - c - 2 * dw
                taps.append(weight[:, :, kh, kw].T)                  # (Cout, Cin)
        w_phases.append(jnp.concatenate(taps, axis=1))               # (Cout, 4*Cin)
    wt = jnp.stack(w_phases, axis=0).astype(jnp.bfloat16)            # (4, Cout, 4*Cin)

    # --- pass 1: transposed conv + per-channel sum/sumsq, gridded over the batch. ---
    y, sums = pl.pallas_call(
        _conv_stats_kernel,
        grid=(n,),
        in_specs=[
            pl.BlockSpec((1, cin, h + 2, w + 2), lambda i: (i, 0, 0, 0)),
            pl.BlockSpec((4, cout, 4 * cin), lambda i: (0, 0, 0)),
        ],
        out_specs=[
            pl.BlockSpec((1, 4, cout, hw), lambda i: (i, 0, 0, 0)),
            pl.BlockSpec((2, cout), lambda i: (0, 0)),               # stats accumulator
        ],
        out_shape=[
            jax.ShapeDtypeStruct((n, 4, cout, hw), jnp.float32),
            jax.ShapeDtypeStruct((2, cout), jnp.float32),
        ],
        compiler_params=pltpu.CompilerParams(
            dimension_semantics=("arbitrary",)),   # accumulator carried across N
    )(xp, wt)

    # --- BatchNorm finalize on tiny (Cout,) vectors; fold affine into scale/shift. ---
    count = jnp.float32(n * ho * wo)
    mean = sums[0] / count
    var = jnp.maximum(sums[1] / count - mean * mean, 0.0)            # biased (train mode)
    scale = gamma.astype(jnp.float32) * lax.rsqrt(var + eps)
    shift = beta.astype(jnp.float32) - mean * scale

    # --- pass 2: folded BN + dropout + ReLU, "parallel" over N. ---
    # TODO(synk): dropout bits come from jax.random (pltpu.prng_* has no interpret-mode
    # lowering and cannot bit-match torch's RNG anyway); on a TPU-only build generate
    # them in-kernel with pltpu.prng_random_bits to avoid streaming the mask from HBM.
    operands = [y, scale.reshape(cout, 1), shift.reshape(cout, 1)]
    in_specs = [
        pl.BlockSpec((1, 4, cout, hw), lambda i: (i, 0, 0, 0)),
        pl.BlockSpec((cout, 1), lambda i: (0, 0)),
        pl.BlockSpec((cout, 1), lambda i: (0, 0)),
    ]
    if apply_dropout:
        bits = jax.random.bits(jax.random.PRNGKey(seed), (n, 4, cout, hw), jnp.uint32)
        operands.append(bits)
        in_specs.append(pl.BlockSpec((1, 4, cout, hw), lambda i: (i, 0, 0, 0)))

    out_ph = pl.pallas_call(
        functools.partial(_bn_dropout_relu_kernel, apply_dropout=apply_dropout),
        grid=(n,),
        in_specs=in_specs,
        out_specs=pl.BlockSpec((1, 4, cout, hw), lambda i: (i, 0, 0, 0)),
        out_shape=jax.ShapeDtypeStruct((n, 4, cout, hw), jnp.float32),
        compiler_params=pltpu.CompilerParams(
            dimension_semantics=("parallel",)),    # independent per-image -> both TCs on v7x
    )(*operands)

    # De-interleave the 4 phases into NCHW: out[:, :, 2a+r, 2b+s] = phase (r, s).
    # TODO(synk): could be folded into kernel 2 via stride-2 stores to drop this XLA pass.
    out = out_ph.reshape(n, 2, 2, cout, h, w)
    return jnp.transpose(out, (0, 3, 4, 1, 5, 2)).reshape(n, cout, ho, wo)


def _reference_no_dropout(x, weight, gamma, beta, eps=1e-5):
    """Pure-JAX reference: ConvTranspose2d -> BN(train) -> ReLU (dropout off).
    Inputs rounded to bf16 to match the kernel's MXU operand precision."""
    xb = x.astype(jnp.bfloat16).astype(jnp.float32)
    wb = weight.astype(jnp.bfloat16).astype(jnp.float32)
    rhs = jnp.transpose(wb, (1, 0, 2, 3))[:, :, ::-1, ::-1]          # (Cout, Cin, 4, 4)
    conv = lax.conv_general_dilated(
        xb, rhs, window_strides=(1, 1), padding=((2, 2), (2, 2)), lhs_dilation=(2, 2),
        dimension_numbers=('NCHW', 'OIHW', 'NCHW'))
    mean = conv.mean(axis=(0, 2, 3), keepdims=True)
    var = ((conv - mean) ** 2).mean(axis=(0, 2, 3), keepdims=True)
    z = (conv - mean) / jnp.sqrt(var + eps)
    z = z * gamma.reshape(1, -1, 1, 1) + beta.reshape(1, -1, 1, 1)
    return jnp.maximum(z, 0.0)


if __name__ == "__main__":
    # Module config: UpSampleBlock(in_ch=4, out_ch=8, use_dropout=True)
    N, in_ch, out_ch, H, W = 2, 4, 8, 16, 16

    key = jax.random.PRNGKey(0)
    kx, kw = jax.random.split(key)
    x = jax.random.normal(kx, (N, in_ch, H, W), jnp.float32)
    # nn.init.normal_(weight, std=0.02); ConvTranspose2d weight layout: (in_ch, out_ch, 4, 4)
    weight = 0.02 * jax.random.normal(kw, (in_ch, out_ch, 4, 4), jnp.float32)
    gamma = jnp.ones((out_ch,), jnp.float32)    # BatchNorm2d default affine params
    beta = jnp.zeros((out_ch,), jnp.float32)

    # Deterministic path (conv -> BN(train) -> ReLU) vs. pure-JAX reference.
    got = jax.block_until_ready(
        upsample_block(x, weight, gamma, beta, seed=0, apply_dropout=False))
    want = jax.block_until_ready(_reference_no_dropout(x, weight, gamma, beta))
    np.testing.assert_allclose(np.asarray(got), np.asarray(want), atol=2e-3, rtol=2e-3)

    # Full forward with training-mode Dropout(0.5).
    out_d = jax.block_until_ready(
        upsample_block(x, weight, gamma, beta, seed=1234, apply_dropout=True))
    assert out_d.shape == (N, out_ch, 2 * H, 2 * W)
    # Dropout invariant: every surviving activation is exactly 2x the no-dropout output.
    got_np, out_np = np.asarray(got), np.asarray(out_d)
    nz = out_np > 0
    np.testing.assert_allclose(out_np[nz], 2.0 * got_np[nz], atol=2e-3, rtol=2e-3)

    print("KERNEL_OK")
</pallas_src>

<mosaic_0001>
module attributes {stable_mosaic.version = 11 : i64} {
  func.func @_conv_stats_kernel(%arg0: i32, %arg1: memref<1x4x18x18xbf16, #tpu.memory_space<vmem>>, %arg2: memref<4x8x16xbf16, #tpu.memory_space<vmem>>, %arg3: memref<1x4x8x256xf32, #tpu.memory_space<vmem>>, %arg4: memref<2x8xf32, #tpu.memory_space<vmem>>) attributes {dimension_semantics = [#tpu.dimension_semantics<arbitrary>], iteration_bounds = array<i64: 2>, scalar_prefetch = 0 : i64, scratch_operands = 0 : i64, tpu.core_type = #tpu.core_type<tc>, window_params = [{transform_indices = @transform_0, window_bounds = array<i64: 1, 4, 18, 18>}, {pipeline_mode = #tpu.pipeline_mode<synchronous>, transform_indices = @transform_1, window_bounds = array<i64: 4, 8, 16>}, {transform_indices = @transform_2, window_bounds = array<i64: 1, 4, 8, 256>}, {pipeline_mode = #tpu.pipeline_mode<synchronous>, transform_indices = @transform_3, window_bounds = array<i64: 2, 8>}]} {
    %c0_i32 = arith.constant 0 : i32
    %0 = arith.cmpi eq, %arg0, %c0_i32 : i32
    %1 = arith.extui %0 : i1 to i32
    %c0_i32_0 = arith.constant 0 : i32
    %2 = arith.cmpi ne, %1, %c0_i32_0 : i32
    scf.if %2 {
      %cst_50 = arith.constant 0.000000e+00 : f32
      %99 = vector.broadcast %cst_50 : f32 to vector<2x8xf32>
      %c0_51 = arith.constant 0 : index
      %c0_52 = arith.constant 0 : index
      %100 = vector.load %arg4[%c0_51, %c0_52] : memref<2x8xf32, #tpu.memory_space<vmem>>, vector<2x8xf32>
      tpu.vector_store %arg4[%c0_51, %c0_52], %99 {strides = array<i32>} : memref<2x8xf32, #tpu.memory_space<vmem>>, vector<2x8xf32>,
    } else {
    }
    %c0 = arith.constant 0 : index
    %c0_1 = arith.constant 0 : index
    %c0_2 = arith.constant 0 : index
    %c0_3 = arith.constant 0 : index
    %3 = vector.load %arg1[%c0, %c0_1, %c0_2, %c0_3] : memref<1x4x18x18xbf16, #tpu.memory_space<vmem>>, vector<1x4x18x18xbf16>
    %4 = vector.shape_cast %3 : vector<1x4x18x18xbf16> to vector<4x18x18xbf16>
    %cst = arith.constant 0.000000e+00 : f32
    %5 = vector.broadcast %cst : f32 to vector<8xf32>
    %cst_4 = arith.constant 0.000000e+00 : f32
    %6 = vector.broadcast %cst_4 : f32 to vector<8xf32>
    %7 = vector.extract_strided_slice %4 {offsets = [0, 0, 0], sizes = [4, 16, 16], strides = [1, 1, 1]} : vector<4x18x18xbf16> to vector<4x16x16xbf16>
    %8 = vector.shape_cast %7 : vector<4x16x16xbf16> to vector<4x256xbf16>
    %9 = vector.extract_strided_slice %4 {offsets = [0, 0, 1], sizes = [4, 16, 16], strides = [1, 1, 1]} : vector<4x18x18xbf16> to vector<4x16x16xbf16>
    %10 = vector.shape_cast %9 : vector<4x16x16xbf16> to vector<4x256xbf16>
    %11 = vector.extract_strided_slice %4 {offsets = [0, 1, 0], sizes = [4, 16, 16], strides = [1, 1, 1]} : vector<4x18x18xbf16> to vector<4x16x16xbf16>
    %12 = vector.shape_cast %11 : vector<4x16x16xbf16> to vector<4x256xbf16>
    %13 = vector.extract_strided_slice %4 {offsets = [0, 1, 1], sizes = [4, 16, 16], strides = [1, 1, 1]} : vector<4x18x18xbf16> to vector<4x16x16xbf16>
    %14 = vector.shape_cast %13 : vector<4x16x16xbf16> to vector<4x256xbf16>
    %15 = tpu.concatenate %8, %10, %12, %14 in 0 : vector<4x256xbf16>, vector<4x256xbf16>, vector<4x256xbf16>, vector<4x256xbf16> -> vector<16x256xbf16>
    %c0_5 = arith.constant 0 : index
    %c0_6 = arith.constant 0 : index
    %c0_7 = arith.constant 0 : index
    %16 = vector.load %arg2[%c0_5, %c0_6, %c0_7] : memref<4x8x16xbf16, #tpu.memory_space<vmem>>, vector<1x8x16xbf16>
    %17 = vector.shape_cast %16 : vector<1x8x16xbf16> to vector<8x16xbf16>
    %cst_8 = arith.constant dense<0.000000e+00> : vector<8x256xf32>
    %18 = tpu.matmul %17, %15, %cst_8 {dimension_numbers = #tpu.dot_dimension_numbers<[1], [0], [0], [1], [0, 0, 1, 1], [], []>} : vector<8x16xbf16>, vector<16x256xbf16>, vector<8x256xf32> -> vector<8x256xf32>
    %c0_9 = arith.constant 0 : index
    %c0_10 = arith.constant 0 : index
    %c0_11 = arith.constant 0 : index
    %c0_12 = arith.constant 0 : index
    %19 = vector.load %arg3[%c0_9, %c0_10, %c0_11, %c0_12] : memref<1x4x8x256xf32, #tpu.memory_space<vmem>>, vector<1x1x8x256xf32>
    %20 = vector.shape_cast %19 : vector<1x1x8x256xf32> to vector<8x256xf32>
    %21 = vector.shape_cast %18 : vector<8x256xf32> to vector<1x1x8x256xf32>
    tpu.vector_store %arg3[%c0_9, %c0_10, %c0_11, %c0_12], %21 {strides = array<i32>} : memref<1x4x8x256xf32, #tpu.memory_space<vmem>>, vector<1x1x8x256xf32>,
    %cst_13 = arith.constant dense<0.000000e+00> : vector<8xf32>
    %22 = vector.multi_reduction <add>, %18, %cst_13 [1] : vector<8x256xf32> to vector<8xf32>
    %23 = arith.addf %5, %22 : vector<8xf32>
    %24 = arith.mulf %18, %18 : vector<8x256xf32>
    %cst_14 = arith.constant dense<0.000000e+00> : vector<8xf32>
    %25 = vector.multi_reduction <add>, %24, %cst_14 [1] : vector<8x256xf32> to vector<8xf32>
    %26 = arith.addf %6, %25 : vector<8xf32>
    %27 = vector.extract_strided_slice %4 {offsets = [0, 0, 1], sizes = [4, 16, 16], strides = [1, 1, 1]} : vector<4x18x18xbf16> to vector<4x16x16xbf16>
    %28 = vector.shape_cast %27 : vector<4x16x16xbf16> to vector<4x256xbf16>
    %29 = vector.extract_strided_slice %4 {offsets = [0, 0, 2], sizes = [4, 16, 16], strides = [1, 1, 1]} : vector<4x18x18xbf16> to vector<4x16x16xbf16>
    %30 = vector.shape_cast %29 : vector<4x16x16xbf16> to vector<4x256xbf16>
    %31 = vector.extract_strided_slice %4 {offsets = [0, 1, 1], sizes = [4, 16, 16], strides = [1, 1, 1]} : vector<4x18x18xbf16> to vector<4x16x16xbf16>
    %32 = vector.shape_cast %31 : vector<4x16x16xbf16> to vector<4x256xbf16>
    %33 = vector.extract_strided_slice %4 {offsets = [0, 1, 2], sizes = [4, 16, 16], strides = [1, 1, 1]} : vector<4x18x18xbf16> to vector<4x16x16xbf16>
    %34 = vector.shape_cast %33 : vector<4x16x16xbf16> to vector<4x256xbf16>
    %35 = tpu.concatenate %28, %30, %32, %34 in 0 : vector<4x256xbf16>, vector<4x256xbf16>, vector<4x256xbf16>, vector<4x256xbf16> -> vector<16x256xbf16>
    %c1 = arith.constant 1 : index
    %c0_15 = arith.constant 0 : index
    %c0_16 = arith.constant 0 : index
    %36 = vector.load %arg2[%c1, %c0_15, %c0_16] : memref<4x8x16xbf16, #tpu.memory_space<vmem>>, vector<1x8x16xbf16>
    %37 = vector.shape_cast %36 : vector<1x8x16xbf16> to vector<8x16xbf16>
    %cst_17 = arith.constant dense<0.000000e+00> : vector<8x256xf32>
    %38 = tpu.matmul %37, %35, %cst_17 {dimension_numbers = #tpu.dot_dimension_numbers<[1], [0], [0], [1], [0, 0, 1, 1], [], []>} : vector<8x16xbf16>, vector<16x256xbf16>, vector<8x256xf32> -> vector<8x256xf32>
    %c0_18 = arith.constant 0 : index
    %c1_19 = arith.constant 1 : index
    %c0_20 = arith.constant 0 : index
    %c0_21 = arith.constant 0 : index
    %39 = vector.load %arg3[%c0_18, %c1_19, %c0_20, %c0_21] : memref<1x4x8x256xf32, #tpu.memory_space<vmem>>, vector<1x1x8x256xf32>
    %40 = vector.shape_cast %39 : vector<1x1x8x256xf32> to vector<8x256xf32>
    %41 = vector.shape_cast %38 : vector<8x256xf32> to vector<1x1x8x256xf32>
    tpu.vector_store %arg3[%c0_18, %c1_19, %c0_20, %c0_21], %41 {strides = array<i32>} : memref<1x4x8x256xf32, #tpu.memory_space<vmem>>, vector<1x1x8x256xf32>,
    %cst_22 = arith.constant dense<0.000000e+00> : vector<8xf32>
    %42 = vector.multi_reduction <add>, %38, %cst_22 [1] : vector<8x256xf32> to vector<8xf32>
    %43 = arith.addf %23, %42 : vector<8xf32>
    %44 = arith.mulf %38, %38 : vector<8x256xf32>
    %cst_23 = arith.constant dense<0.000000e+00> : vector<8xf32>
    %45 = vector.multi_reduction <add>, %44, %cst_23 [1] : vector<8x256xf32> to vector<8xf32>
    %46 = arith.addf %26, %45 : vector<8xf32>
    %47 = vector.extract_strided_slice %4 {offsets = [0, 1, 0], sizes = [4, 16, 16], strides = [1, 1, 1]} : vector<4x18x18xbf16> to vector<4x16x16xbf16>
    %48 = vector.shape_cast %47 : vector<4x16x16xbf16> to vector<4x256xbf16>
    %49 = vector.extract_strided_slice %4 {offsets = [0, 1, 1], sizes = [4, 16, 16], strides = [1, 1, 1]} : vector<4x18x18xbf16> to vector<4x16x16xbf16>
    %50 = vector.shape_cast %49 : vector<4x16x16xbf16> to vector<4x256xbf16>
    %51 = vector.extract_strided_slice %4 {offsets = [0, 2, 0], sizes = [4, 16, 16], strides = [1, 1, 1]} : vector<4x18x18xbf16> to vector<4x16x16xbf16>
    %52 = vector.shape_cast %51 : vector<4x16x16xbf16> to vector<4x256xbf16>
    %53 = vector.extract_strided_slice %4 {offsets = [0, 2, 1], sizes = [4, 16, 16], strides = [1, 1, 1]} : vector<4x18x18xbf16> to vector<4x16x16xbf16>
    %54 = vector.shape_cast %53 : vector<4x16x16xbf16> to vector<4x256xbf16>
    %55 = tpu.concatenate %48, %50, %52, %54 in 0 : vector<4x256xbf16>, vector<4x256xbf16>, vector<4x256xbf16>, vector<4x256xbf16> -> vector<16x256xbf16>
    %c2 = arith.constant 2 : index
    %c0_24 = arith.constant 0 : index
    %c0_25 = arith.constant 0 : index
    %56 = vector.load %arg2[%c2, %c0_24, %c0_25] : memref<4x8x16xbf16, #tpu.memory_space<vmem>>, vector<1x8x16xbf16>
    %57 = vector.shape_cast %56 : vector<1x8x16xbf16> to vector<8x16xbf16>
    %cst_26 = arith.constant dense<0.000000e+00> : vector<8x256xf32>
    %58 = tpu.matmul %57, %55, %cst_26 {dimension_numbers = #tpu.dot_dimension_numbers<[1], [0], [0], [1], [0, 0, 1, 1], [], []>} : vector<8x16xbf16>, vector<16x256xbf16>, vector<8x256xf32> -> vector<8x256xf32>
    %c0_27 = arith.constant 0 : index
    %c2_28 = arith.constant 2 : index
    %c0_29 = arith.constant 0 : index
    %c0_30 = arith.constant 0 : index
    %59 = vector.load %arg3[%c0_27, %c2_28, %c0_29, %c0_30] : memref<1x4x8x256xf32, #tpu.memory_space<vmem>>, vector<1x1x8x256xf32>
    %60 = vector.shape_cast %59 : vector<1x1x8x256xf32> to vector<8x256xf32>
    %61 = vector.shape_cast %58 : vector<8x256xf32> to vector<1x1x8x256xf32>
    tpu.vector_store %arg3[%c0_27, %c2_28, %c0_29, %c0_30], %61 {strides = array<i32>} : memref<1x4x8x256xf32, #tpu.memory_space<vmem>>, vector<1x1x8x256xf32>,
    %cst_31 = arith.constant dense<0.000000e+00> : vector<8xf32>
    %62 = vector.multi_reduction <add>, %58, %cst_31 [1] : vector<8x256xf32> to vector<8xf32>
    %63 = arith.addf %43, %62 : vector<8xf32>
    %64 = arith.mulf %58, %58 : vector<8x256xf32>
    %cst_32 = arith.constant dense<0.000000e+00> : vector<8xf32>
    %65 = vector.multi_reduction <add>, %64, %cst_32 [1] : vector<8x256xf32> to vector<8xf32>
    %66 = arith.addf %46, %65 : vector<8xf32>
    %67 = vector.extract_strided_slice %4 {offsets = [0, 1, 1], sizes = [4, 16, 16], strides = [1, 1, 1]} : vector<4x18x18xbf16> to vector<4x16x16xbf16>
    %68 = vector.shape_cast %67 : vector<4x16x16xbf16> to vector<4x256xbf16>
    %69 = vector.extract_strided_slice %4 {offsets = [0, 1, 2], sizes = [4, 16, 16], strides = [1, 1, 1]} : vector<4x18x18xbf16> to vector<4x16x16xbf16>
    %70 = vector.shape_cast %69 : vector<4x16x16xbf16> to vector<4x256xbf16>
    %71 = vector.extract_strided_slice %4 {offsets = [0, 2, 1], sizes = [4, 16, 16], strides = [1, 1, 1]} : vector<4x18x18xbf16> to vector<4x16x16xbf16>
    %72 = vector.shape_cast %71 : vector<4x16x16xbf16> to vector<4x256xbf16>
    %73 = vector.extract_strided_slice %4 {offsets = [0, 2, 2], sizes = [4, 16, 16], strides = [1, 1, 1]} : vector<4x18x18xbf16> to vector<4x16x16xbf16>
    %74 = vector.shape_cast %73 : vector<4x16x16xbf16> to vector<4x256xbf16>
    %75 = tpu.concatenate %68, %70, %72, %74 in 0 : vector<4x256xbf16>, vector<4x256xbf16>, vector<4x256xbf16>, vector<4x256xbf16> -> vector<16x256xbf16>
    %c3 = arith.constant 3 : index
    %c0_33 = arith.constant 0 : index
    %c0_34 = arith.constant 0 : index
    %76 = vector.load %arg2[%c3, %c0_33, %c0_34] : memref<4x8x16xbf16, #tpu.memory_space<vmem>>, vector<1x8x16xbf16>
    %77 = vector.shape_cast %76 : vector<1x8x16xbf16> to vector<8x16xbf16>
    %cst_35 = arith.constant dense<0.000000e+00> : vector<8x256xf32>
    %78 = tpu.matmul %77, %75, %cst_35 {dimension_numbers = #tpu.dot_dimension_numbers<[1], [0], [0], [1], [0, 0, 1, 1], [], []>} : vector<8x16xbf16>, vector<16x256xbf16>, vector<8x256xf32> -> vector<8x256xf32>
    %c0_36 = arith.constant 0 : index
    %c3_37 = arith.constant 3 : index
    %c0_38 = arith.constant 0 : index
    %c0_39 = arith.constant 0 : index
    %79 = vector.load %arg3[%c0_36, %c3_37, %c0_38, %c0_39] : memref<1x4x8x256xf32, #tpu.memory_space<vmem>>, vector<1x1x8x256xf32>
    %80 = vector.shape_cast %79 : vector<1x1x8x256xf32> to vector<8x256xf32>
    %81 = vector.shape_cast %78 : vector<8x256xf32> to vector<1x1x8x256xf32>
    tpu.vector_store %arg3[%c0_36, %c3_37, %c0_38, %c0_39], %81 {strides = array<i32>} : memref<1x4x8x256xf32, #tpu.memory_space<vmem>>, vector<1x1x8x256xf32>,
    %cst_40 = arith.constant dense<0.000000e+00> : vector<8xf32>
    %82 = vector.multi_reduction <add>, %78, %cst_40 [1] : vector<8x256xf32> to vector<8xf32>
    %83 = arith.addf %63, %82 : vector<8xf32>
    %84 = arith.mulf %78, %78 : vector<8x256xf32>
    %cst_41 = arith.constant dense<0.000000e+00> : vector<8xf32>
    %85 = vector.multi_reduction <add>, %84, %cst_41 [1] : vector<8x256xf32> to vector<8xf32>
    %86 = arith.addf %66, %85 : vector<8xf32>
    %c0_42 = arith.constant 0 : index
    %c0_43 = arith.constant 0 : index
    %87 = vector.load %arg4[%c0_42, %c0_43] : memref<2x8xf32, #tpu.memory_space<vmem>>, vector<1x8xf32>
    %88 = vector.shape_cast %87 : vector<1x8xf32> to vector<8xf32>
    %89 = arith.addf %88, %83 : vector<8xf32>
    %c0_44 = arith.constant 0 : index
    %c0_45 = arith.constant 0 : index
    %90 = vector.load %arg4[%c0_44, %c0_45] : memref<2x8xf32, #tpu.memory_space<vmem>>, vector<1x8xf32>
    %91 = vector.shape_cast %90 : vector<1x8xf32> to vector<8xf32>
    %92 = vector.shape_cast %89 : vector<8xf32> to vector<1x8xf32>
    tpu.vector_store %arg4[%c0_44, %c0_45], %92 {strides = array<i32>} : memref<2x8xf32, #tpu.memory_space<vmem>>, vector<1x8xf32>,
    %c1_46 = arith.constant 1 : index
    %c0_47 = arith.constant 0 : index
    %93 = vector.load %arg4[%c1_46, %c0_47] : memref<2x8xf32, #tpu.memory_space<vmem>>, vector<1x8xf32>
    %94 = vector.shape_cast %93 : vector<1x8xf32> to vector<8xf32>
    %95 = arith.addf %94, %86 : vector<8xf32>
    %c1_48 = arith.constant 1 : index
    %c0_49 = arith.constant 0 : index
    %96 = vector.load %arg4[%c1_48, %c0_49] : memref<2x8xf32, #tpu.memory_space<vmem>>, vector<1x8xf32>
    %97 = vector.shape_cast %96 : vector<1x8xf32> to vector<8xf32>
    %98 = vector.shape_cast %95 : vector<8xf32> to vector<1x8xf32>
    tpu.vector_store %arg4[%c1_48, %c0_49], %98 {strides = array<i32>} : memref<2x8xf32, #tpu.memory_space<vmem>>, vector<1x8xf32>,
    return
  }
  func.func @transform_0(%arg0: i32) -> (i32, i32, i32, i32) {
    %c0_i32 = arith.constant 0 : i32
    %c0_i32_0 = arith.constant 0 : i32
    %c0_i32_1 = arith.constant 0 : i32
    %c0_i32_2 = arith.constant 0 : i32
    return %arg0, %c0_i32, %c0_i32_0, %c0_i32_1 : i32, i32, i32, i32
  }
  func.func @transform_1(%arg0: i32) -> (i32, i32, i32) {
    %c0_i32 = arith.constant 0 : i32
    %c0_i32_0 = arith.constant 0 : i32
    %c0_i32_1 = arith.constant 0 : i32
    %c0_i32_2 = arith.constant 0 : i32
    return %c0_i32, %c0_i32_0, %c0_i32_1 : i32, i32, i32
  }
  func.func @transform_2(%arg0: i32) -> (i32, i32, i32, i32) {
    %c0_i32 = arith.constant 0 : i32
    %c0_i32_0 = arith.constant 0 : i32
    %c0_i32_1 = arith.constant 0 : i32
    %c0_i32_2 = arith.constant 0 : i32
    return %arg0, %c0_i32, %c0_i32_0, %c0_i32_1 : i32, i32, i32, i32
  }
  func.func @transform_3(%arg0: i32) -> (i32, i32) {
    %c0_i32 = arith.constant 0 : i32
    %c0_i32_0 = arith.constant 0 : i32
    %c0_i32_1 = arith.constant 0 : i32
    return %c0_i32, %c0_i32_0 : i32, i32
  }
}

</mosaic_0001>

<llo_original>
// kernel: tpu_custom_call.1
$region0: #{tpu_custom_call.1}
  #allocation0 [shape = 'u32[]', space=smem, size = 0x4, offset = 0x4, fixed_abs, tag = 'smem constant byte address 0x4 - core index']
  #allocation1 [shape = 'u32[72,128]{1,0:T(1,128)}', space=vmem, size = 0x9000, scoped, tag = 'internal scratch']
  %s0 = inlined_call_operand.vmem [shape: bf16[2,4,18,18], index: 0, kind: input, shape index: {}]
  %s1 = inlined_call_operand.vmem [shape: bf16[4,8,16], index: 1, kind: input, shape index: {}]
  %s2 = inlined_call_operand.hbm [shape: f32[2,4,8,256], index: 2, kind: output, shape index: {0}]
  %s3 = inlined_call_operand.hbm [shape: f32[2,8], index: 3, kind: output, shape index: {1}]
  %4 = xla_tuple %s2, %s3
  %s5 = sld [smem:[#allocation0]]
  $region53: #{tpu_custom_call.1} parent=0
    _
  %s7 = ssub.s32 1, %s5
  %s8 = scalar_select 0, %s7, %s5
  $region1: #{tpu_custom_call.1} parent=0
    #allocation2 [shape = 'u8[65536]{0}', space=vmem, size = 0x10000, scoped, tag = 'output window, operand 0']
    #allocation3 [shape = 's32[2]{0}', space=sflag, size = 0x8, scoped, tag = 'scoped memory for tpu_custom_call.1']
    #allocation4 [shape = 'u8[1024]{0}', space=vmem, size = 0x400, scoped, tag = 'output window, operand 1, single buffered']
    #allocation5 [shape = 's32[1]{0}', space=sflag, size = 0x4, scoped, tag = 'scoped memory for tpu_custom_call.1']
    %9 = vsyncpa [#allocation3], 0
    %s10 = scalar_lea.sflag [#allocation3], 1
    %11 = vsyncpa %s10, 0
    %12 = vsyncpa [#allocation5], 0
    loop: start=0, step=1, limit=4
    $region2: #{tpu_custom_call.1} parent=1 // loop_pre_header
      _
    $region3: #{tpu_custom_call.1} parent=1 // loop_header
      %s14 = sphi 0, %s18
      %p15 = scmp.ge.s32.totalorder %s14, 4
      %s24 = sphi 0, %s26
      %s27 = sphi 0, %s24
      %s28 = sphi 0, %s27
      %s44 = sphi 0, %s28
      %s48 = sphi 0, %s48
      %s50 = sphi 0, %s48
      %s51 = sphi 0, %s50
      %s65 = sphi 0, %s51
      %s71 = sphi 0, %s73
      %s74 = sphi 0, %s71
      %s75 = sphi 0, %s74
      %s91 = sphi 0, %s75
      %s95 = sphi 0, %s95
      %s97 = sphi 0, %s95
      %s98 = sphi 0, %s97
      %s112 = sphi 0, %s98
    $region4: #{tpu_custom_call.1} parent=1 // loop_header_branch
      %17 = sbr.rel (%p15) target = $region8
    $region5: #{tpu_custom_call.1} parent=1 // loop_body
      %s19 = ssub.s32 %s14, 1
      %s20 = ssub.s32 %s14, 2
      %s21 = sadd.s32 %s14, 1
      %s22 = ssub.s32 %s14, %s21
      %p23 = scmp.eq.s32.totalorder %s22, 0
      %s25 = sadd.s32 %s24, 1
      %s26 = scalar_select %p23, %s24, %s25
      %p29 = pneg %p23
      %p30 = scmp.eq.s32.totalorder %s14, 1
      %p31 = por %p29, %p30
      %p32 = scmp.ne.s32.totalorder %s24, %s27
      %p33 = scmp.eq.s32.totalorder %s14, 0
      %p34 = por %p32, %p33
      %p35 = scmp.ne.s32.totalorder %s24, %s27
      %p36 = scmp.eq.s32.totalorder %s19, 1
      %p37 = por %p35, %p36
      %p38 = scmp.ne.s32.totalorder %s27, %s28
      %p39 = scmp.eq.s32.totalorder %s19, 0
      %p40 = por %p38, %p39
      %p41 = scmp.ne.s32.totalorder %s27, %s28
      %p42 = scmp.eq.s32.totalorder %s20, 1
      %p43 = por %p41, %p42
      %p45 = scmp.ne.s32.totalorder %s28, %s44
      %p46 = scmp.eq.s32.totalorder %s20, 0
      %p47 = por %p45, %p46
      %s49 = sadd.s32 %s48, 1
      %p52 = scmp.eq.s32.totalorder %s14, 1
      %p53 = scmp.ne.s32.totalorder %s48, %s50
      %p54 = scmp.eq.s32.totalorder %s14, 0
      %p55 = por %p53, %p54
      %p56 = scmp.ne.s32.totalorder %s48, %s50
      %p57 = scmp.eq.s32.totalorder %s19, 1
      %p58 = por %p56, %p57
      %p59 = scmp.ne.s32.totalorder %s50, %s51
      %p60 = scmp.eq.s32.totalorder %s19, 0
      %p61 = por %p59, %p60
      %p62 = scmp.ne.s32.totalorder %s50, %s51
      %p63 = scmp.eq.s32.totalorder %s20, 1
      %p64 = por %p62, %p63
      %p66 = scmp.ne.s32.totalorder %s51, %s65
      %p67 = scmp.eq.s32.totalorder %s20, 0
      %p68 = por %p66, %p67
      %s69 = ssub.s32 %s14, %s21
      %p70 = scmp.eq.s32.totalorder %s69, 0
      %s72 = sadd.s32 %s71, 1
      %s73 = scalar_select %p70, %s71, %s72
      %p76 = pneg %p70
      %p77 = scmp.eq.s32.totalorder %s14, 1
      %p78 = por %p76, %p77
      %p79 = scmp.ne.s32.totalorder %s71, %s74
      %p80 = scmp.eq.s32.totalorder %s14, 0
      %p81 = por %p79, %p80
      %p82 = scmp.ne.s32.totalorder %s71, %s74
      %p83 = scmp.eq.s32.totalorder %s19, 1
      %p84 = por %p82, %p83
      %p85 = scmp.ne.s32.totalorder %s74, %s75
      %p86 = scmp.eq.s32.totalorder %s19, 0
      %p87 = por %p85, %p86
      %p88 = scmp.ne.s32.totalorder %s74, %s75
      %p89 = scmp.eq.s32.totalorder %s20, 1
      %p90 = por %p88, %p89
      %p92 = scmp.ne.s32.totalorder %s75, %s91
      %p93 = scmp.eq.s32.totalorder %s20, 0
      %p94 = por %p92, %p93
      %s96 = sadd.s32 %s95, 1
      %p99 = scmp.eq.s32.totalorder %s14, 1
      %p100 = scmp.ne.s32.totalorder %s95, %s97
      %p101 = scmp.eq.s32.totalorder %s14, 0
      %p102 = por %p100, %p101
      %p103 = scmp.ne.s32.totalorder %s95, %s97
      %p104 = scmp.eq.s32.totalorder %s19, 1
      %p105 = por %p103, %p104
      %p106 = scmp.ne.s32.totalorder %s97, %s98
      %p107 = scmp.eq.s32.totalorder %s19, 0
      %p108 = por %p106, %p107
      %p109 = scmp.ne.s32.totalorder %s97, %s98
      %p110 = scmp.eq.s32.totalorder %s20, 1
      %p111 = por %p109, %p110
      %p113 = scmp.ne.s32.totalorder %s98, %s112
      %p114 = scmp.eq.s32.totalorder %s20, 0
      %p115 = por %p113, %p114
      %p116 = scmp.le.s32.totalorder 1, %s14
      %p117 = scmp.lt.s32.totalorder %s14, 3
      %p118 = pnand %p116, %p117
      %p119 = pneg %p118
      // Predicated region
      $region9: #{tpu_custom_call.1} parent=5 // pred_check
        _
      $region10: #{tpu_custom_call.1} parent=5 // pred_check_branch
        %121 = sbr.rel (%p118) target = $region12
      $region11: #{tpu_custom_call.1} parent=5 // pred_region
        %s122 = ssub.s32 %s14, 1
        // Predicated region
        $region13: #{tpu_custom_call.1} parent=11 // pred_check
          %p123 = pneg %p61
        $region14: #{tpu_custom_call.1} parent=11 // pred_check_branch
          %125 = sbr.rel (%p123) target = $region16
        $region15: #{tpu_custom_call.1} parent=11 // pred_region
          _
        $region16: #{tpu_custom_call.1} parent=11 // pred_fallthru
          _
      $region12: #{tpu_custom_call.1} parent=5 // pred_fallthru
        _
      %p126 = scmp.lt.s32.totalorder %s14, 2
      // Predicated region
      $region17: #{tpu_custom_call.1} parent=5 // pred_check
        %p127 = pneg %p126
      $region18: #{tpu_custom_call.1} parent=5 // pred_check_branch
        %129 = sbr.rel (%p127) target = $region20
      $region19: #{tpu_custom_call.1} parent=5 // pred_region
        // Predicated region
        $region21: #{tpu_custom_call.1} parent=19 // pred_check
          %p130 = pneg %p34
        $region22: #{tpu_custom_call.1} parent=19 // pred_check_branch
          %132 = sbr.rel (%p130) target = $region24
        $region23: #{tpu_custom_call.1} parent=19 // pred_region
          %p133 = scmp.lt.s32.totalorder %s14, 1
          %s134 = scalar_select %p133, %s14, 1
          %s135 = smul.addr %s134, 12
          %s136 = smul.addr %s135, 4
          %s137 = scalar_lea.vmem %s0, %s136
        $region24: #{tpu_custom_call.1} parent=19 // pred_fallthru
          _
      $region20: #{tpu_custom_call.1} parent=5 // pred_fallthru
        _
      %p138 = scmp.le.s32.totalorder 1, %s14
      %p139 = scmp.lt.s32.totalorder %s14, 3
      %p140 = pnand %p138, %p139
      %p141 = pneg %p140
      // Predicated region
      $region25: #{tpu_custom_call.1} parent=5 // pred_check
        _
      $region26: #{tpu_custom_call.1} parent=5 // pred_check_branch
        %143 = sbr.rel (%p140) target = $region28
      $region27: #{tpu_custom_call.1} parent=5 // pred_region
        %s144 = ssub.s32 %s14, 1
        %p145 = scmp.lt.s32.totalorder %s19, 1
        %s146 = scalar_select %p145, %s19, 1
        %s147 = smul.addr %s146, 12
        %s148 = smul.addr %s147, 4
        %s149 = scalar_lea.vmem %s0, %s148
        %p150 = pneg %p40
        %p151 = pneg %p37
        %p152 = pneg %p61
        %p153 = pneg %p58
        %p154 = pneg %p87
        %p155 = pneg %p84
        %s156 = sand.u32 %s74, 1
        %s157 = scalar_lea.sflag [#allocation3], %s156
        %s158 = sand.u32 %s74, 1
        %s159 = smul.addr %s158, 64
        %s160 = scalar_lea.vmem [#allocation2], %s159
        %p161 = pneg %p108
        %p162 = pneg %p105
        %p163 = scmp.lt.s32.totalorder %s19, 1
        %s164 = scalar_select %p163, %s19, 1
        %s165 = smul.addr %s164, 12
        %s166 = smul.addr %s165, 4
        %s167 = scalar_lea.vmem %s0, %s166
        %p169 = scmp.eq.s32.totalorder %s19, 0
        // Predicated region
        $region29: #{tpu_custom_call.1} parent=27 // pred_check
          %p170 = pneg %p169
        $region30: #{tpu_custom_call.1} parent=27 // pred_check_branch
          %172 = sbr.rel (%p170) target = $region32
        $region31: #{tpu_custom_call.1} parent=27 // pred_region
          %vm173 = vcmask 58368
          %174 = vst.msk [vmem:[#allocation4] sm:$0x3] %vm173, 0.0
        $region32: #{tpu_custom_call.1} parent=27 // pred_fallthru
          _
        %v175 = vld [vmem:[%s167] sm:$0xf]
        %v176 = vld [vmem:[%s167 + $0x4] sm:$0xf]
        %v177 = vld [vmem:[%s167 + $0x8] sm:$0x1]
        %v178 = vld [vmem:[%s167 + $0xc] sm:$0xf]
        %v179 = vld [vmem:[%s167 + $0x10] sm:$0xf]
        %v180 = vld [vmem:[%s167 + $0x14] sm:$0x1]
        %v181 = vld [vmem:[%s167 + $0x18] sm:$0xf]
        %v182 = vld [vmem:[%s167 + $0x1c] sm:$0xf]
        %v183 = vld [vmem:[%s167 + $0x20] sm:$0x1]
        %v184 = vld [vmem:[%s167 + $0x24] sm:$0xf]
        %v185 = vld [vmem:[%s167 + $0x28] sm:$0xf]
        %v186 = vld [vmem:[%s167 + $0x2c] sm:$0x1]
        %v189 = vpack.i.b16 %v178, %v175
        %v190 = vshrl.u32 %v175, 16
        %v191 = vshrl.u32 %v178, 16
        %v192 = vpack.i.b16 %v191, %v190
        %v195 = vpack.i.b16 %v184, %v181
        %v196 = vshrl.u32 %v181, 16
        %v197 = vshrl.u32 %v184, 16
        %v198 = vpack.i.b16 %v197, %v196
        %v201 = vpack.i.b16 %v179, %v176
        %v202 = vshrl.u32 %v176, 16
        %v203 = vshrl.u32 %v179, 16
        %v204 = vpack.i.b16 %v203, %v202
        %v207 = vpack.i.b16 %v185, %v182
        %v208 = vshrl.u32 %v182, 16
        %v209 = vshrl.u32 %v185, 16
        %v210 = vpack.i.b16 %v209, %v208
        %v213 = vunpack.c.l.s4 1983009808
        %v214 = vunpack.c.0.s8 %v213
        %v215 = vperm.slane %v189, %v214
        %v218 = vunpack.c.l.s4 1983009808
        %v219 = vunpack.c.0.s8 %v218
        %v220 = vperm.slane %v195, %v219
        %v221 = vrot.slane %v220, 4
        %vm222 = vcmask 1047556
        %v223 = vsel %vm222, %v221, %v215
        %v224 = vrot.slane %v215, 4
        %v225 = vsel %vm222, %v220, %v224
        %v227 = vunpack.c.l.s4 1934713408
        %v228 = vunpack.c.0.s8 %v227
        %v229 = vperm.slane %v223, %v228
        %v231 = vunpack.c.l.s4 1934713408
        %v232 = vunpack.c.0.s8 %v231
        %v233 = vperm.slane %v225, %v232
        %v234 = vrot.slane %v229, 4
        %v235 = vsel %vm222, 0, %v234
        %v236 = vrot.slane %v233, 4
        %v237 = vsel %vm222, 0, %v236
        %v240 = vunpack.c.l.s4 1983009808
        %v241 = vunpack.c.0.s8 %v240
        %v242 = vperm.slane %v192, %v241
        %v245 = vunpack.c.l.s4 1983009808
        %v246 = vunpack.c.0.s8 %v245
        %v247 = vperm.slane %v198, %v246
        %v248 = vrot.slane %v247, 4
        %v249 = vsel %vm222, %v248, %v242
        %v250 = vrot.slane %v242, 4
        %v251 = vsel %vm222, %v247, %v250
        %v253 = vunpack.c.l.s4 1934713408
        %v254 = vunpack.c.0.s8 %v253
        %v255 = vperm.slane %v249, %v254
        %v257 = vunpack.c.l.s4 1934713408
        %v258 = vunpack.c.0.s8 %v257
        %v259 = vperm.slane %v251, %v258
        %v260 = vrot.slane %v255, 4
        %v261 = vsel %vm222, 0, %v260
        %v262 = vrot.slane %v259, 4
        %v263 = vsel %vm222, 0, %v262
        %v266 = vunpack.c.l.s4 1983009808
        %v267 = vunpack.c.0.s8 %v266
        %v268 = vperm.slane %v201, %v267
        %v271 = vunpack.c.l.s4 1983009808
        %v272 = vunpack.c.0.s8 %v271
        %v273 = vperm.slane %v207, %v272
        %v274 = vrot.slane %v273, 4
        %v275 = vsel %vm222, %v274, %v268
        %v276 = vrot.slane %v268, 4
        %v277 = vsel %vm222, %v273, %v276
        %v279 = vunpack.c.l.s4 1934713408
        %v280 = vunpack.c.0.s8 %v279
        %v281 = vperm.slane %v275, %v280
        %v283 = vunpack.c.l.s4 1934713408
        %v284 = vunpack.c.0.s8 %v283
        %v285 = vperm.slane %v277, %v284
        %v286 = vrot.slane %v281, 4
        %v287 = vsel %vm222, 0, %v286
        %v288 = vrot.slane %v285, 4
        %v289 = vsel %vm222, 0, %v288
        %v292 = vunpack.c.l.s4 1983009808
        %v293 = vunpack.c.0.s8 %v292
        %v294 = vperm.slane %v204, %v293
        %v297 = vunpack.c.l.s4 1983009808
        %v298 = vunpack.c.0.s8 %v297
        %v299 = vperm.slane %v210, %v298
        %v300 = vrot.slane %v299, 4
        %v301 = vsel %vm222, %v300, %v294
        %v302 = vrot.slane %v294, 4
        %v303 = vsel %vm222, %v299, %v302
        %v305 = vunpack.c.l.s4 1934713408
        %v306 = vunpack.c.0.s8 %v305
        %v307 = vperm.slane %v301, %v306
        %v309 = vunpack.c.l.s4 1934713408
        %v310 = vunpack.c.0.s8 %v309
        %v311 = vperm.slane %v303, %v310
        %v312 = vrot.slane %v307, 4
        %v313 = vsel %vm222, 0, %v312
        %v314 = vrot.slane %v311, 4
        %v315 = vsel %vm222, 0, %v314
        %v317 = vunpack.c.l.b16 %v255
        %v318 = vpack.c.b16 %v317, %v317
        %319 = vrot.lane.b32.xlu0 %v318, 16
        %v320 = vpop.permute.xlu0 %319
        %v322 = vunpack.c.l.b16 %v235
        %v323 = vpack.c.b16 %v322, %v322
        %324 = vrot.lane.b32.xlu0 %v323, 32
        %v325 = vpop.permute.xlu0 %324
        %v327 = vunpack.c.l.b16 %v261
        %v328 = vpack.c.b16 %v327, %v327
        %329 = vrot.lane.b32.xlu0 %v328, 48
        %v330 = vpop.permute.xlu0 %329
        %v332 = vunpack.c.l.b16 %v233
        %v333 = vpack.c.b16 %v332, %v332
        %334 = vrot.lane.b32.xlu0 %v333, 64
        %v335 = vpop.permute.xlu0 %334
        %v337 = vunpack.c.l.b16 %v259
        %v338 = vpack.c.b16 %v337, %v337
        %339 = vrot.lane.b32.xlu0 %v338, 80
        %v340 = vpop.permute.xlu0 %339
        %v342 = vunpack.c.l.b16 %v237
        %v343 = vpack.c.b16 %v342, %v342
        %344 = vrot.lane.b32.xlu0 %v343, 96
        %v345 = vpop.permute.xlu0 %344
        %v347 = vunpack.c.l.b16 %v263
        %v348 = vpack.c.b16 %v347, %v347
        %349 = vrot.lane.b32.xlu0 %v348, 112
        %v350 = vpop.permute.xlu0 %349
        %v352 = vunpack.c.l.b16 %v307
        %v353 = vpack.c.b16 %v352, %v352
        %354 = vrot.lane.b32.xlu0 %v353, 16
        %v355 = vpop.permute.xlu0 %354
        %v357 = vunpack.c.l.b16 %v287
        %v358 = vpack.c.b16 %v357, %v357
        %359 = vrot.lane.b32.xlu0 %v358, 32
        %v360 = vpop.permute.xlu0 %359
        %v362 = vunpack.c.l.b16 %v313
        %v363 = vpack.c.b16 %v362, %v362
        %364 = vrot.lane.b32.xlu0 %v363, 48
        %v365 = vpop.permute.xlu0 %364
        %v367 = vunpack.c.l.b16 %v285
        %v368 = vpack.c.b16 %v367, %v367
        %369 = vrot.lane.b32.xlu0 %v368, 64
        %v370 = vpop.permute.xlu0 %369
        %v372 = vunpack.c.l.b16 %v311
        %v373 = vpack.c.b16 %v372, %v372
        %374 = vrot.lane.b32.xlu0 %v373, 80
        %v375 = vpop.permute.xlu0 %374
        %v377 = vunpack.c.l.b16 %v289
        %v378 = vpack.c.b16 %v377, %v377
        %379 = vrot.lane.b32.xlu0 %v378, 96
        %v380 = vpop.permute.xlu0 %379
        %v382 = vunpack.c.l.b16 %v315
        %v383 = vpack.c.b16 %v382, %v382
        %384 = vrot.lane.b32.xlu0 %v383, 112
        %v385 = vpop.permute.xlu0 %384
        %vm386 = vcmask 130048
        %v389 = vsel %vm386, %v229, %v320
        %vm390 = vcmask 261120
        %v392 = vsel %vm390, %v389, %v325
        %vm393 = vcmask 392192
        %v395 = vsel %vm393, %v392, %v330
        %vm396 = vcmask 523264
        %v398 = vsel %vm396, %v395, %v335
        %vm399 = vcmask 654336
        %v401 = vsel %vm399, %v398, %v340
        %vm402 = vcmask 785408
        %v404 = vsel %vm402, %v401, %v345
        %vm405 = vcmask 916480
        %v407 = vsel %vm405, %v404, %v350
        %v410 = vsel %vm386, %v281, %v355
        %v412 = vsel %vm390, %v410, %v360
        %v414 = vsel %vm393, %v412, %v365
        %v416 = vsel %vm396, %v414, %v370
        %v418 = vsel %vm399, %v416, %v375
        %v420 = vsel %vm402, %v418, %v380
        %v422 = vsel %vm405, %v420, %v385
        %431 = vrot.lane.b32.xlu0 %v175, 127
        %v432 = vpop.permute.xlu0 %431
        %433 = vrot.lane.b32.xlu0 %v176, 127
        %v434 = vpop.permute.xlu0 %433
        %435 = vrot.lane.b32.xlu0 %v178, 127
        %v436 = vpop.permute.xlu0 %435
        %437 = vrot.lane.b32.xlu0 %v179, 127
        %v438 = vpop.permute.xlu0 %437
        %439 = vrot.lane.b32.xlu0 %v181, 127
        %v440 = vpop.permute.xlu0 %439
        %441 = vrot.lane.b32.xlu0 %v182, 127
        %v442 = vpop.permute.xlu0 %441
        %443 = vrot.lane.b32.xlu0 %v184, 127
        %v444 = vpop.permute.xlu0 %443
        %445 = vrot.lane.b32.xlu0 %v185, 127
        %v446 = vpop.permute.xlu0 %445
        %v449 = vpack.i.b16 %v436, %v432
        %v450 = vshrl.u32 %v432, 16
        %v451 = vshrl.u32 %v436, 16
        %v452 = vpack.i.b16 %v451, %v450
        %v455 = vpack.i.b16 %v444, %v440
        %v456 = vshrl.u32 %v440, 16
        %v457 = vshrl.u32 %v444, 16
        %v458 = vpack.i.b16 %v457, %v456
        %v461 = vpack.i.b16 %v438, %v434
        %v462 = vshrl.u32 %v434, 16
        %v463 = vshrl.u32 %v438, 16
        %v464 = vpack.i.b16 %v463, %v462
        %v467 = vpack.i.b16 %v446, %v442
        %v468 = vshrl.u32 %v442, 16
        %v469 = vshrl.u32 %v446, 16
        %v470 = vpack.i.b16 %v469, %v468
        %v473 = vunpack.c.l.s4 1983009808
        %v474 = vunpack.c.0.s8 %v473
        %v475 = vperm.slane %v449, %v474
        %v478 = vunpack.c.l.s4 1983009808
        %v479 = vunpack.c.0.s8 %v478
        %v480 = vperm.slane %v455, %v479
        %v481 = vrot.slane %v480, 4
        %v482 = vsel %vm222, %v481, %v475
        %v483 = vrot.slane %v475, 4
        %v484 = vsel %vm222, %v480, %v483
        %v486 = vunpack.c.l.s4 1934713408
        %v487 = vunpack.c.0.s8 %v486
        %v488 = vperm.slane %v482, %v487
        %v490 = vunpack.c.l.s4 1934713408
        %v491 = vunpack.c.0.s8 %v490
        %v492 = vperm.slane %v484, %v491
        %v493 = vrot.slane %v488, 4
        %v494 = vsel %vm222, 0, %v493
        %v495 = vrot.slane %v492, 4
        %v496 = vsel %vm222, 0, %v495
        %v499 = vunpack.c.l.s4 1983009808
        %v500 = vunpack.c.0.s8 %v499
        %v501 = vperm.slane %v452, %v500
        %v504 = vunpack.c.l.s4 1983009808
        %v505 = vunpack.c.0.s8 %v504
        %v506 = vperm.slane %v458, %v505
        %v507 = vrot.slane %v506, 4
        %v508 = vsel %vm222, %v507, %v501
        %v509 = vrot.slane %v501, 4
        %v510 = vsel %vm222, %v506, %v509
        %v512 = vunpack.c.l.s4 1934713408
        %v513 = vunpack.c.0.s8 %v512
        %v514 = vperm.slane %v508, %v513
        %v516 = vunpack.c.l.s4 1934713408
        %v517 = vunpack.c.0.s8 %v516
        %v518 = vperm.slane %v510, %v517
        %v519 = vrot.slane %v514, 4
        %v520 = vsel %vm222, 0, %v519
        %v521 = vrot.slane %v518, 4
        %v522 = vsel %vm222, 0, %v521
        %v525 = vunpack.c.l.s4 1983009808
        %v526 = vunpack.c.0.s8 %v525
        %v527 = vperm.slane %v461, %v526
        %v530 = vunpack.c.l.s4 1983009808
        %v531 = vunpack.c.0.s8 %v530
        %v532 = vperm.slane %v467, %v531
        %v533 = vrot.slane %v532, 4
        %v534 = vsel %vm222, %v533, %v527
        %v535 = vrot.slane %v527, 4
        %v536 = vsel %vm222, %v532, %v535
        %v538 = vunpack.c.l.s4 1934713408
        %v539 = vunpack.c.0.s8 %v538
        %v540 = vperm.slane %v534, %v539
        %v542 = vunpack.c.l.s4 1934713408
        %v543 = vunpack.c.0.s8 %v542
        %v544 = vperm.slane %v536, %v543
        %v545 = vrot.slane %v540, 4
        %v546 = vsel %vm222, 0, %v545
        %v547 = vrot.slane %v544, 4
        %v548 = vsel %vm222, 0, %v547
        %v551 = vunpack.c.l.s4 1983009808
        %v552 = vunpack.c.0.s8 %v551
        %v553 = vperm.slane %v464, %v552
        %v556 = vunpack.c.l.s4 1983009808
        %v557 = vunpack.c.0.s8 %v556
        %v558 = vperm.slane %v470, %v557
        %v559 = vrot.slane %v558, 4
        %v560 = vsel %vm222, %v559, %v553
        %v561 = vrot.slane %v553, 4
        %v562 = vsel %vm222, %v558, %v561
        %v564 = vunpack.c.l.s4 1934713408
        %v565 = vunpack.c.0.s8 %v564
        %v566 = vperm.slane %v560, %v565
        %v568 = vunpack.c.l.s4 1934713408
        %v569 = vunpack.c.0.s8 %v568
        %v570 = vperm.slane %v562, %v569
        %v571 = vrot.slane %v566, 4
        %v572 = vsel %vm222, 0, %v571
        %v573 = vrot.slane %v570, 4
        %v574 = vsel %vm222, 0, %v573
        %v576 = vunpack.c.l.b16 %v514
        %v577 = vpack.c.b16 %v576, %v576
        %578 = vrot.lane.b32.xlu0 %v577, 16
        %v579 = vpop.permute.xlu0 %578
        %v581 = vunpack.c.l.b16 %v494
        %v582 = vpack.c.b16 %v581, %v581
        %583 = vrot.lane.b32.xlu0 %v582, 32
        %v584 = vpop.permute.xlu0 %583
        %v586 = vunpack.c.l.b16 %v520
        %v587 = vpack.c.b16 %v586, %v586
        %588 = vrot.lane.b32.xlu0 %v587, 48
        %v589 = vpop.permute.xlu0 %588
        %v591 = vunpack.c.l.b16 %v492
        %v592 = vpack.c.b16 %v591, %v591
        %593 = vrot.lane.b32.xlu0 %v592, 64
        %v594 = vpop.permute.xlu0 %593
        %v596 = vunpack.c.l.b16 %v518
        %v597 = vpack.c.b16 %v596, %v596
        %598 = vrot.lane.b32.xlu0 %v597, 80
        %v599 = vpop.permute.xlu0 %598
        %v601 = vunpack.c.l.b16 %v496
        %v602 = vpack.c.b16 %v601, %v601
        %603 = vrot.lane.b32.xlu0 %v602, 96
        %v604 = vpop.permute.xlu0 %603
        %v606 = vunpack.c.l.b16 %v522
        %v607 = vpack.c.b16 %v606, %v606
        %608 = vrot.lane.b32.xlu0 %v607, 112
        %v609 = vpop.permute.xlu0 %608
        %v611 = vunpack.c.l.b16 %v566
        %v612 = vpack.c.b16 %v611, %v611
        %613 = vrot.lane.b32.xlu0 %v612, 16
        %v614 = vpop.permute.xlu0 %613
        %v616 = vunpack.c.l.b16 %v546
        %v617 = vpack.c.b16 %v616, %v616
        %618 = vrot.lane.b32.xlu0 %v617, 32
        %v619 = vpop.permute.xlu0 %618
        %v621 = vunpack.c.l.b16 %v572
        %v622 = vpack.c.b16 %v621, %v621
        %623 = vrot.lane.b32.xlu0 %v622, 48
        %v624 = vpop.permute.xlu0 %623
        %v626 = vunpack.c.l.b16 %v544
        %v627 = vpack.c.b16 %v626, %v626
        %628 = vrot.lane.b32.xlu0 %v627, 64
        %v629 = vpop.permute.xlu0 %628
        %v631 = vunpack.c.l.b16 %v570
        %v632 = vpack.c.b16 %v631, %v631
        %633 = vrot.lane.b32.xlu0 %v632, 80
        %v634 = vpop.permute.xlu0 %633
        %v636 = vunpack.c.l.b16 %v548
        %v637 = vpack.c.b16 %v636, %v636
        %638 = vrot.lane.b32.xlu0 %v637, 96
        %v639 = vpop.permute.xlu0 %638
        %v641 = vunpack.c.l.b16 %v574
        %v642 = vpack.c.b16 %v641, %v641
        %643 = vrot.lane.b32.xlu0 %v642, 112
        %v644 = vpop.permute.xlu0 %643
        %v647 = vsel %vm386, %v488, %v579
        %v649 = vsel %vm390, %v647, %v584
        %v651 = vsel %vm393, %v649, %v589
        %v653 = vsel %vm396, %v651, %v594
        %v655 = vsel %vm399, %v653, %v599
        %v657 = vsel %vm402, %v655, %v604
        %v659 = vsel %vm405, %v657, %v609
        %v662 = vsel %vm386, %v540, %v614
        %v664 = vsel %vm390, %v662, %v619
        %v666 = vsel %vm393, %v664, %v624
        %v668 = vsel %vm396, %v666, %v629
        %v670 = vsel %vm399, %v668, %v634
        %v672 = vsel %vm402, %v670, %v639
        %v674 = vsel %vm405, %v672, %v644
        %vm675 = vsmask.f32 3328
        %vm676 = vsmask.f32 7440
        %vm677 = vmor %vm675, %vm676
        %v679 = vrot.slane %v190, 4
        %v680 = vshll.u32 %v175, 16
        %v682 = vrot.slane %v680, 5
        %v683 = vor.u32 %v679, %v682
        %v684 = vrot.slane %v683, 4
        %v685 = vshll.u32 %v176, 16
        %v687 = vrot.slane %v685, 5
        %v688 = vsel %vm677, %v684, %v687
        %v690 = vrot.slane %v202, 4
        %v691 = vor.u32 %v690, %v687
        %v692 = vrot.slane %v691, 4
        %v694 = vshll.u32 %v177, 16
        %v696 = vrot.slane %v694, 5
        %v697 = vsel %vm677, %v692, %v696
        %v699 = vrot.slane %v191, 4
        %v700 = vshll.u32 %v178, 16
        %v702 = vrot.slane %v700, 5
        %v703 = vor.u32 %v699, %v702
        %v704 = vrot.slane %v703, 4
        %v705 = vshll.u32 %v179, 16
        %v707 = vrot.slane %v705, 5
        %v708 = vsel %vm677, %v704, %v707
        %v710 = vrot.slane %v203, 4
        %v711 = vor.u32 %v710, %v707
        %v712 = vrot.slane %v711, 4
        %v714 = vshll.u32 %v180, 16
        %v716 = vrot.slane %v714, 5
        %v717 = vsel %vm677, %v712, %v716
        %v719 = vrot.slane %v196, 4
        %v720 = vshll.u32 %v181, 16
        %v722 = vrot.slane %v720, 5
        %v723 = vor.u32 %v719, %v722
        %v724 = vrot.slane %v723, 4
        %v725 = vshll.u32 %v182, 16
        %v727 = vrot.slane %v725, 5
        %v728 = vsel %vm677, %v724, %v727
        %v730 = vrot.slane %v208, 4
        %v731 = vor.u32 %v730, %v727
        %v732 = vrot.slane %v731, 4
        %v734 = vshll.u32 %v183, 16
        %v736 = vrot.slane %v734, 5
        %v737 = vsel %vm677, %v732, %v736
        %v739 = vrot.slane %v197, 4
        %v740 = vshll.u32 %v184, 16
        %v742 = vrot.slane %v740, 5
        %v743 = vor.u32 %v739, %v742
        %v744 = vrot.slane %v743, 4
        %v745 = vshll.u32 %v185, 16
        %v747 = vrot.slane %v745, 5
        %v748 = vsel %vm677, %v744, %v747
        %v750 = vrot.slane %v209, 4
        %v751 = vor.u32 %v750, %v747
        %v752 = vrot.slane %v751, 4
        %v754 = vshll.u32 %v186, 16
        %v756 = vrot.slane %v754, 5
        %v757 = vsel %vm677, %v752, %v756
        %v760 = vpack.i.b16 %v708, %v688
        %v761 = vshrl.u32 %v688, 16
        %v762 = vshrl.u32 %v708, 16
        %v763 = vpack.i.b16 %v762, %v761
        %v766 = vpack.i.b16 %v748, %v728
        %v767 = vshrl.u32 %v728, 16
        %v768 = vshrl.u32 %v748, 16
        %v769 = vpack.i.b16 %v768, %v767
        %v772 = vpack.i.b16 %v717, %v697
        %v773 = vshrl.u32 %v697, 16
        %v774 = vshrl.u32 %v717, 16
        %v775 = vpack.i.b16 %v774, %v773
        %v778 = vpack.i.b16 %v757, %v737
        %v779 = vshrl.u32 %v737, 16
        %v780 = vshrl.u32 %v757, 16
        %v781 = vpack.i.b16 %v780, %v779
        %v784 = vunpack.c.l.s4 1983009808
        %v785 = vunpack.c.0.s8 %v784
        %v786 = vperm.slane %v760, %v785
        %v789 = vunpack.c.l.s4 1983009808
        %v790 = vunpack.c.0.s8 %v789
        %v791 = vperm.slane %v766, %v790
        %v792 = vrot.slane %v791, 4
        %v793 = vsel %vm222, %v792, %v786
        %v794 = vrot.slane %v786, 4
        %v795 = vsel %vm222, %v791, %v794
        %v797 = vunpack.c.l.s4 1934713408
        %v798 = vunpack.c.0.s8 %v797
        %v799 = vperm.slane %v793, %v798
        %v801 = vunpack.c.l.s4 1934713408
        %v802 = vunpack.c.0.s8 %v801
        %v803 = vperm.slane %v795, %v802
        %v804 = vrot.slane %v799, 4
        %v805 = vsel %vm222, 0, %v804
        %v806 = vrot.slane %v803, 4
        %v807 = vsel %vm222, 0, %v806
        %v810 = vunpack.c.l.s4 1983009808
        %v811 = vunpack.c.0.s8 %v810
        %v812 = vperm.slane %v763, %v811
        %v815 = vunpack.c.l.s4 1983009808
        %v816 = vunpack.c.0.s8 %v815
        %v817 = vperm.slane %v769, %v816
        %v818 = vrot.slane %v817, 4
        %v819 = vsel %vm222, %v818, %v812
        %v820 = vrot.slane %v812, 4
        %v821 = vsel %vm222, %v817, %v820
        %v823 = vunpack.c.l.s4 1934713408
        %v824 = vunpack.c.0.s8 %v823
        %v825 = vperm.slane %v819, %v824
        %v827 = vunpack.c.l.s4 1934713408
        %v828 = vunpack.c.0.s8 %v827
        %v829 = vperm.slane %v821, %v828
        %v830 = vrot.slane %v825, 4
        %v831 = vsel %vm222, 0, %v830
        %v832 = vrot.slane %v829, 4
        %v833 = vsel %vm222, 0, %v832
        %v836 = vunpack.c.l.s4 1983009808
        %v837 = vunpack.c.0.s8 %v836
        %v838 = vperm.slane %v772, %v837
        %v841 = vunpack.c.l.s4 1983009808
        %v842 = vunpack.c.0.s8 %v841
        %v843 = vperm.slane %v778, %v842
        %v844 = vrot.slane %v843, 4
        %v845 = vsel %vm222, %v844, %v838
        %v846 = vrot.slane %v838, 4
        %v847 = vsel %vm222, %v843, %v846
        %v849 = vunpack.c.l.s4 1934713408
        %v850 = vunpack.c.0.s8 %v849
        %v851 = vperm.slane %v845, %v850
        %v853 = vunpack.c.l.s4 1934713408
        %v854 = vunpack.c.0.s8 %v853
        %v855 = vperm.slane %v847, %v854
        %v856 = vrot.slane %v851, 4
        %v857 = vsel %vm222, 0, %v856
        %v858 = vrot.slane %v855, 4
        %v859 = vsel %vm222, 0, %v858
        %v862 = vunpack.c.l.s4 1983009808
        %v863 = vunpack.c.0.s8 %v862
        %v864 = vperm.slane %v775, %v863
        %v867 = vunpack.c.l.s4 1983009808
        %v868 = vunpack.c.0.s8 %v867
        %v869 = vperm.slane %v781, %v868
        %v870 = vrot.slane %v869, 4
        %v871 = vsel %vm222, %v870, %v864
        %v872 = vrot.slane %v864, 4
        %v873 = vsel %vm222, %v869, %v872
        %v875 = vunpack.c.l.s4 1934713408
        %v876 = vunpack.c.0.s8 %v875
        %v877 = vperm.slane %v871, %v876
        %v879 = vunpack.c.l.s4 1934713408
        %v880 = vunpack.c.0.s8 %v879
        %v881 = vperm.slane %v873, %v880
        %v882 = vrot.slane %v877, 4
        %v883 = vsel %vm222, 0, %v882
        %v884 = vrot.slane %v881, 4
        %v885 = vsel %vm222, 0, %v884
        %v887 = vunpack.c.l.b16 %v825
        %v888 = vpack.c.b16 %v887, %v887
        %889 = vrot.lane.b32.xlu0 %v888, 16
        %v890 = vpop.permute.xlu0 %889
        %v892 = vunpack.c.l.b16 %v805
        %v893 = vpack.c.b16 %v892, %v892
        %894 = vrot.lane.b32.xlu0 %v893, 32
        %v895 = vpop.permute.xlu0 %894
        %v897 = vunpack.c.l.b16 %v831
        %v898 = vpack.c.b16 %v897, %v897
        %899 = vrot.lane.b32.xlu0 %v898, 48
        %v900 = vpop.permute.xlu0 %899
        %v902 = vunpack.c.l.b16 %v803
        %v903 = vpack.c.b16 %v902, %v902
        %904 = vrot.lane.b32.xlu0 %v903, 64
        %v905 = vpop.permute.xlu0 %904
        %v907 = vunpack.c.l.b16 %v829
        %v908 = vpack.c.b16 %v907, %v907
        %909 = vrot.lane.b32.xlu0 %v908, 80
        %v910 = vpop.permute.xlu0 %909
        %v912 = vunpack.c.l.b16 %v807
        %v913 = vpack.c.b16 %v912, %v912
        %914 = vrot.lane.b32.xlu0 %v913, 96
        %v915 = vpop.permute.xlu0 %914
        %v917 = vunpack.c.l.b16 %v833
        %v918 = vpack.c.b16 %v917, %v917
        %919 = vrot.lane.b32.xlu0 %v918, 112
        %v920 = vpop.permute.xlu0 %919
        %v922 = vunpack.c.l.b16 %v877
        %v923 = vpack.c.b16 %v922, %v922
        %924 = vrot.lane.b32.xlu0 %v923, 16
        %v925 = vpop.permute.xlu0 %924
        %v927 = vunpack.c.l.b16 %v857
        %v928 = vpack.c.b16 %v927, %v927
        %929 = vrot.lane.b32.xlu0 %v928, 32
        %v930 = vpop.permute.xlu0 %929
        %v932 = vunpack.c.l.b16 %v883
        %v933 = vpack.c.b16 %v932, %v932
        %934 = vrot.lane.b32.xlu0 %v933, 48
        %v935 = vpop.permute.xlu0 %934
        %v937 = vunpack.c.l.b16 %v855
        %v938 = vpack.c.b16 %v937, %v937
        %939 = vrot.lane.b32.xlu0 %v938, 64
        %v940 = vpop.permute.xlu0 %939
        %v942 = vunpack.c.l.b16 %v881
        %v943 = vpack.c.b16 %v942, %v942
        %944 = vrot.lane.b32.xlu0 %v943, 80
        %v945 = vpop.permute.xlu0 %944
        %v947 = vunpack.c.l.b16 %v859
        %v948 = vpack.c.b16 %v947, %v947
        %949 = vrot.lane.b32.xlu0 %v948, 96
        %v950 = vpop.permute.xlu0 %949
        %v952 = vunpack.c.l.b16 %v885
        %v953 = vpack.c.b16 %v952, %v952
        %954 = vrot.lane.b32.xlu0 %v953, 112
        %v955 = vpop.permute.xlu0 %954
        %v958 = vsel %vm386, %v799, %v890
        %v960 = vsel %vm390, %v958, %v895
        %v962 = vsel %vm393, %v960, %v900
        %v964 = vsel %vm396, %v962, %v905
        %v966 = vsel %vm399, %v964, %v910
        %v968 = vsel %vm402, %v966, %v915
        %v970 = vsel %vm405, %v968, %v920
        %v973 = vsel %vm386, %v851, %v925
        %v975 = vsel %vm390, %v973, %v930
        %v977 = vsel %vm393, %v975, %v935
        %v979 = vsel %vm396, %v977, %v940
        %v981 = vsel %vm399, %v979, %v945
        %v983 = vsel %vm402, %v981, %v950
        %v985 = vsel %vm405, %v983, %v955
        %986 = vrot.lane.b32.xlu0 %v688, 127
        %v987 = vpop.permute.xlu0 %986
        %988 = vrot.lane.b32.xlu0 %v697, 127
        %v989 = vpop.permute.xlu0 %988
        %990 = vrot.lane.b32.xlu0 %v708, 127
        %v991 = vpop.permute.xlu0 %990
        %992 = vrot.lane.b32.xlu0 %v717, 127
        %v993 = vpop.permute.xlu0 %992
        %994 = vrot.lane.b32.xlu0 %v728, 127
        %v995 = vpop.permute.xlu0 %994
        %996 = vrot.lane.b32.xlu0 %v737, 127
        %v997 = vpop.permute.xlu0 %996
        %998 = vrot.lane.b32.xlu0 %v748, 127
        %v999 = vpop.permute.xlu0 %998
        %1000 = vrot.lane.b32.xlu0 %v757, 127
        %v1001 = vpop.permute.xlu0 %1000
        %v1004 = vpack.i.b16 %v991, %v987
        %v1005 = vshrl.u32 %v987, 16
        %v1006 = vshrl.u32 %v991, 16
        %v1007 = vpack.i.b16 %v1006, %v1005
        %v1010 = vpack.i.b16 %v999, %v995
        %v1011 = vshrl.u32 %v995, 16
        %v1012 = vshrl.u32 %v999, 16
        %v1013 = vpack.i.b16 %v1012, %v1011
        %v1016 = vpack.i.b16 %v993, %v989
        %v1017 = vshrl.u32 %v989, 16
        %v1018 = vshrl.u32 %v993, 16
        %v1019 = vpack.i.b16 %v1018, %v1017
        %v1022 = vpack.i.b16 %v1001, %v997
        %v1023 = vshrl.u32 %v997, 16
        %v1024 = vshrl.u32 %v1001, 16
        %v1025 = vpack.i.b16 %v1024, %v1023
        %v1028 = vunpack.c.l.s4 1983009808
        %v1029 = vunpack.c.0.s8 %v1028
        %v1030 = vperm.slane %v1004, %v1029
        %v1033 = vunpack.c.l.s4 1983009808
        %v1034 = vunpack.c.0.s8 %v1033
        %v1035 = vperm.slane %v1010, %v1034
        %v1036 = vrot.slane %v1035, 4
        %v1037 = vsel %vm222, %v1036, %v1030
        %v1038 = vrot.slane %v1030, 4
        %v1039 = vsel %vm222, %v1035, %v1038
        %v1041 = vunpack.c.l.s4 1934713408
        %v1042 = vunpack.c.0.s8 %v1041
        %v1043 = vperm.slane %v1037, %v1042
        %v1045 = vunpack.c.l.s4 1934713408
        %v1046 = vunpack.c.0.s8 %v1045
        %v1047 = vperm.slane %v1039, %v1046
        %v1048 = vrot.slane %v1043, 4
        %v1049 = vsel %vm222, 0, %v1048
        %v1050 = vrot.slane %v1047, 4
        %v1051 = vsel %vm222, 0, %v1050
        %v1054 = vunpack.c.l.s4 1983009808
        %v1055 = vunpack.c.0.s8 %v1054
        %v1056 = vperm.slane %v1007, %v1055
        %v1059 = vunpack.c.l.s4 1983009808
        %v1060 = vunpack.c.0.s8 %v1059
        %v1061 = vperm.slane %v1013, %v1060
        %v1062 = vrot.slane %v1061, 4
        %v1063 = vsel %vm222, %v1062, %v1056
        %v1064 = vrot.slane %v1056, 4
        %v1065 = vsel %vm222, %v1061, %v1064
        %v1067 = vunpack.c.l.s4 1934713408
        %v1068 = vunpack.c.0.s8 %v1067
        %v1069 = vperm.slane %v1063, %v1068
        %v1071 = vunpack.c.l.s4 1934713408
        %v1072 = vunpack.c.0.s8 %v1071
        %v1073 = vperm.slane %v1065, %v1072
        %v1074 = vrot.slane %v1069, 4
        %v1075 = vsel %vm222, 0, %v1074
        %v1076 = vrot.slane %v1073, 4
        %v1077 = vsel %vm222, 0, %v1076
        %v1080 = vunpack.c.l.s4 1983009808
        %v1081 = vunpack.c.0.s8 %v1080
        %v1082 = vperm.slane %v1016, %v1081
        %v1085 = vunpack.c.l.s4 1983009808
        %v1086 = vunpack.c.0.s8 %v1085
        %v1087 = vperm.slane %v1022, %v1086
        %v1088 = vrot.slane %v1087, 4
        %v1089 = vsel %vm222, %v1088, %v1082
        %v1090 = vrot.slane %v1082, 4
        %v1091 = vsel %vm222, %v1087, %v1090
        %v1093 = vunpack.c.l.s4 1934713408
        %v1094 = vunpack.c.0.s8 %v1093
        %v1095 = vperm.slane %v1089, %v1094
        %v1097 = vunpack.c.l.s4 1934713408
        %v1098 = vunpack.c.0.s8 %v1097
        %v1099 = vperm.slane %v1091, %v1098
        %v1100 = vrot.slane %v1095, 4
        %v1101 = vsel %vm222, 0, %v1100
        %v1102 = vrot.slane %v1099, 4
        %v1103 = vsel %vm222, 0, %v1102
        %v1106 = vunpack.c.l.s4 1983009808
        %v1107 = vunpack.c.0.s8 %v1106
        %v1108 = vperm.slane %v1019, %v1107
        %v1111 = vunpack.c.l.s4 1983009808
        %v1112 = vunpack.c.0.s8 %v1111
        %v1113 = vperm.slane %v1025, %v1112
        %v1114 = vrot.slane %v1113, 4
        %v1115 = vsel %vm222, %v1114, %v1108
        %v1116 = vrot.slane %v1108, 4
        %v1117 = vsel %vm222, %v1113, %v1116
        %v1119 = vunpack.c.l.s4 1934713408
        %v1120 = vunpack.c.0.s8 %v1119
        %v1121 = vperm.slane %v1115, %v1120
        %v1123 = vunpack.c.l.s4 1934713408
        %v1124 = vunpack.c.0.s8 %v1123
        %v1125 = vperm.slane %v1117, %v1124
        %v1126 = vrot.slane %v1121, 4
        %v1127 = vsel %vm222, 0, %v1126
        %v1128 = vrot.slane %v1125, 4
        %v1129 = vsel %vm222, 0, %v1128
        %v1131 = vunpack.c.l.b16 %v1069
        %v1132 = vpack.c.b16 %v1131, %v1131
        %1133 = vrot.lane.b32.xlu0 %v1132, 16
        %v1134 = vpop.permute.xlu0 %1133
        %v1136 = vunpack.c.l.b16 %v1049
        %v1137 = vpack.c.b16 %v1136, %v1136
        %1138 = vrot.lane.b32.xlu0 %v1137, 32
        %v1139 = vpop.permute.xlu0 %1138
        %v1141 = vunpack.c.l.b16 %v1075
        %v1142 = vpack.c.b16 %v1141, %v1141
        %1143 = vrot.lane.b32.xlu0 %v1142, 48
        %v1144 = vpop.permute.xlu0 %1143
        %v1146 = vunpack.c.l.b16 %v1047
        %v1147 = vpack.c.b16 %v1146, %v1146
        %1148 = vrot.lane.b32.xlu0 %v1147, 64
        %v1149 = vpop.permute.xlu0 %1148
        %v1151 = vunpack.c.l.b16 %v1073
        %v1152 = vpack.c.b16 %v1151, %v1151
        %1153 = vrot.lane.b32.xlu0 %v1152, 80
        %v1154 = vpop.permute.xlu0 %1153
        %v1156 = vunpack.c.l.b16 %v1051
        %v1157 = vpack.c.b16 %v1156, %v1156
        %1158 = vrot.lane.b32.xlu0 %v1157, 96
        %v1159 = vpop.permute.xlu0 %1158
        %v1161 = vunpack.c.l.b16 %v1077
        %v1162 = vpack.c.b16 %v1161, %v1161
        %1163 = vrot.lane.b32.xlu0 %v1162, 112
        %v1164 = vpop.permute.xlu0 %1163
        %v1166 = vunpack.c.l.b16 %v1121
        %v1167 = vpack.c.b16 %v1166, %v1166
        %1168 = vrot.lane.b32.xlu0 %v1167, 16
        %v1169 = vpop.permute.xlu0 %1168
        %v1171 = vunpack.c.l.b16 %v1101
        %v1172 = vpack.c.b16 %v1171, %v1171
        %1173 = vrot.lane.b32.xlu0 %v1172, 32
        %v1174 = vpop.permute.xlu0 %1173
        %v1176 = vunpack.c.l.b16 %v1127
        %v1177 = vpack.c.b16 %v1176, %v1176
        %1178 = vrot.lane.b32.xlu0 %v1177, 48
        %v1179 = vpop.permute.xlu0 %1178
        %v1181 = vunpack.c.l.b16 %v1099
        %v1182 = vpack.c.b16 %v1181, %v1181
        %1183 = vrot.lane.b32.xlu0 %v1182, 64
        %v1184 = vpop.permute.xlu0 %1183
        %v1186 = vunpack.c.l.b16 %v1125
        %v1187 = vpack.c.b16 %v1186, %v1186
        %1188 = vrot.lane.b32.xlu0 %v1187, 80
        %v1189 = vpop.permute.xlu0 %1188
        %v1191 = vunpack.c.l.b16 %v1103
        %v1192 = vpack.c.b16 %v1191, %v1191
        %1193 = vrot.lane.b32.xlu0 %v1192, 96
        %v1194 = vpop.permute.xlu0 %1193
        %v1196 = vunpack.c.l.b16 %v1129
        %v1197 = vpack.c.b16 %v1196, %v1196
        %1198 = vrot.lane.b32.xlu0 %v1197, 112
        %v1199 = vpop.permute.xlu0 %1198
        %v1202 = vsel %vm386, %v1043, %v1134
        %v1204 = vsel %vm390, %v1202, %v1139
        %v1206 = vsel %vm393, %v1204, %v1144
        %v1208 = vsel %vm396, %v1206, %v1149
        %v1210 = vsel %vm399, %v1208, %v1154
        %v1212 = vsel %vm402, %v1210, %v1159
        %v1214 = vsel %vm405, %v1212, %v1164
        %v1217 = vsel %vm386, %v1095, %v1169
        %v1219 = vsel %vm390, %v1217, %v1174
        %v1221 = vsel %vm393, %v1219, %v1179
        %v1223 = vsel %vm396, %v1221, %v1184
        %v1225 = vsel %vm399, %v1223, %v1189
        %v1227 = vsel %vm402, %v1225, %v1194
        %v1229 = vsel %vm405, %v1227, %v1199
        %v1232 = vrot.slane %v659, 6
        %v1233 = vrot.slane %v674, 6
        %v1236 = vrot.slane %v970, 4
        %v1237 = vrot.slane %v985, 4
        %v1240 = vrot.slane %v1214, 2
        %v1241 = vrot.slane %v1229, 2
        %vm1242 = vcmask 1041408
        %v1244 = vsel %vm1242, %v407, %v1232
        %v1246 = vsel %vm1242, %v422, %v1233
        %vm1247 = vcmask 1043456
        %v1249 = vsel %vm1247, %v1244, %v1236
        %v1251 = vsel %vm1247, %v1246, %v1237
        %vm1252 = vcmask 1045504
        %v1254 = vsel %vm1252, %v1249, %v1240
        %v1257 = vsel %vm1252, %v1251, %v1241
        %v1259 = vld [vmem:[%s1] sm:$0xf]
        %v1261 = vsel %vm386, %v1259, 0
        %1263 = vmatpush.bf16.msra.mxu0 0
        %1264 = vmatpush.bf16.msra.mxu0 0
        %1265 = vmatpush.bf16.msra.mxu0 0
        %1266 = vmatpush.bf16.msra.mxu0 0
        %1267 = vmatpush.bf16.msra.mxu0 0
        %1268 = vmatpush.bf16.msra.mxu0 0
        %1269 = vmatpush.bf16.msra.mxu0 0
        %1270 = vmatpush.bf16.msra.mxu0 %v1254
        %1271 = vmatmul.bf16.gmra.mxu0 %v1261
        %v1272 = vpop.f32.mrf.mxu0
        %v1273 = vadd.f32 0.0, %v1272
        %v1274 = vpop.f32.mrf.mxu0
        %1275 = vdwg.mxu0
        %1276 = vmatpush.bf16.msra.mxu0 0
        %1277 = vmatpush.bf16.msra.mxu0 0
        %1278 = vmatpush.bf16.msra.mxu0 0
        %1279 = vmatpush.bf16.msra.mxu0 0
        %1280 = vmatpush.bf16.msra.mxu0 0
        %1281 = vmatpush.bf16.msra.mxu0 0
        %1282 = vmatpush.bf16.msra.mxu0 0
        %1283 = vmatpush.bf16.msra.mxu0 %v1257
        %1284 = vmatmul.bf16.gmra.mxu0 %v1261
        %v1285 = vpop.f32.mrf.mxu0
        %v1286 = vadd.f32 0.0, %v1285
        %v1287 = vpop.f32.mrf.mxu0
        %1288 = vdwg.mxu0
        %1289 = vst [vmem:[%s160] sm:$0xff] %v1273
        %1290 = vst [vmem:[%s160 + $0x8] sm:$0xff] %v1286
        %v1291 = vadd.f32 %v1273, %v1286
        %1292 = vadd.xlane.f32.xlu0 %v1291
        %v1293 = vpop.xlane.xlu0 %1292
        %v1294 = vadd.f32 %v1293, 0.0
        %v1295 = vmul.f32 %v1273, %v1273
        %v1296 = vmul.f32 %v1286, %v1286
        %v1297 = vadd.f32 %v1295, %v1296
        %1298 = vadd.xlane.f32.xlu0 %v1297
        %v1299 = vpop.xlane.xlu0 %1298
        %v1300 = vadd.f32 %v1299, 0.0
        %1301 = vrot.lane.b32.xlu0 %v175, 126
        %v1302 = vpop.permute.xlu0 %1301
        %1303 = vrot.lane.b32.xlu0 %v176, 126
        %v1304 = vpop.permute.xlu0 %1303
        %1305 = vrot.lane.b32.xlu0 %v178, 126
        %v1306 = vpop.permute.xlu0 %1305
        %1307 = vrot.lane.b32.xlu0 %v179, 126
        %v1308 = vpop.permute.xlu0 %1307
        %1309 = vrot.lane.b32.xlu0 %v181, 126
        %v1310 = vpop.permute.xlu0 %1309
        %1311 = vrot.lane.b32.xlu0 %v182, 126
        %v1312 = vpop.permute.xlu0 %1311
        %1313 = vrot.lane.b32.xlu0 %v184, 126
        %v1314 = vpop.permute.xlu0 %1313
        %1315 = vrot.lane.b32.xlu0 %v185, 126
        %v1316 = vpop.permute.xlu0 %1315
        %v1319 = vpack.i.b16 %v1306, %v1302
        %v1320 = vshrl.u32 %v1302, 16
        %v1321 = vshrl.u32 %v1306, 16
        %v1322 = vpack.i.b16 %v1321, %v1320
        %v1325 = vpack.i.b16 %v1314, %v1310
        %v1326 = vshrl.u32 %v1310, 16
        %v1327 = vshrl.u32 %v1314, 16
        %v1328 = vpack.i.b16 %v1327, %v1326
        %v1331 = vpack.i.b16 %v1308, %v1304
        %v1332 = vshrl.u32 %v1304, 16
        %v1333 = vshrl.u32 %v1308, 16
        %v1334 = vpack.i.b16 %v1333, %v1332
        %v1337 = vpack.i.b16 %v1316, %v1312
        %v1338 = vshrl.u32 %v1312, 16
        %v1339 = vshrl.u32 %v1316, 16
        %v1340 = vpack.i.b16 %v1339, %v1338
        %v1343 = vunpack.c.l.s4 1983009808
        %v1344 = vunpack.c.0.s8 %v1343
        %v1345 = vperm.slane %v1319, %v1344
        %v1348 = vunpack.c.l.s4 1983009808
        %v1349 = vunpack.c.0.s8 %v1348
        %v1350 = vperm.slane %v1325, %v1349
        %v1351 = vrot.slane %v1350, 4
        %v1352 = vsel %vm222, %v1351, %v1345
        %v1353 = vrot.slane %v1345, 4
        %v1354 = vsel %vm222, %v1350, %v1353
        %v1356 = vunpack.c.l.s4 1934713408
        %v1357 = vunpack.c.0.s8 %v1356
        %v1358 = vperm.slane %v1352, %v1357
        %v1360 = vunpack.c.l.s4 1934713408
        %v1361 = vunpack.c.0.s8 %v1360
        %v1362 = vperm.slane %v1354, %v1361
        %v1363 = vrot.slane %v1358, 4
        %v1364 = vsel %vm222, 0, %v1363
        %v1365 = vrot.slane %v1362, 4
        %v1366 = vsel %vm222, 0, %v1365
        %v1369 = vunpack.c.l.s4 1983009808
        %v1370 = vunpack.c.0.s8 %v1369
        %v1371 = vperm.slane %v1322, %v1370
        %v1374 = vunpack.c.l.s4 1983009808
        %v1375 = vunpack.c.0.s8 %v1374
        %v1376 = vperm.slane %v1328, %v1375
        %v1377 = vrot.slane %v1376, 4
        %v1378 = vsel %vm222, %v1377, %v1371
        %v1379 = vrot.slane %v1371, 4
        %v1380 = vsel %vm222, %v1376, %v1379
        %v1382 = vunpack.c.l.s4 1934713408
        %v1383 = vunpack.c.0.s8 %v1382
        %v1384 = vperm.slane %v1378, %v1383
        %v1386 = vunpack.c.l.s4 1934713408
        %v1387 = vunpack.c.0.s8 %v1386
        %v1388 = vperm.slane %v1380, %v1387
        %v1389 = vrot.slane %v1384, 4
        %v1390 = vsel %vm222, 0, %v1389
        %v1391 = vrot.slane %v1388, 4
        %v1392 = vsel %vm222, 0, %v1391
        %v1395 = vunpack.c.l.s4 1983009808
        %v1396 = vunpack.c.0.s8 %v1395
        %v1397 = vperm.slane %v1331, %v1396
        %v1400 = vunpack.c.l.s4 1983009808
        %v1401 = vunpack.c.0.s8 %v1400
        %v1402 = vperm.slane %v1337, %v1401
        %v1403 = vrot.slane %v1402, 4
        %v1404 = vsel %vm222, %v1403, %v1397
        %v1405 = vrot.slane %v1397, 4
        %v1406 = vsel %vm222, %v1402, %v1405
        %v1408 = vunpack.c.l.s4 1934713408
        %v1409 = vunpack.c.0.s8 %v1408
        %v1410 = vperm.slane %v1404, %v1409
        %v1412 = vunpack.c.l.s4 1934713408
        %v1413 = vunpack.c.0.s8 %v1412
        %v1414 = vperm.slane %v1406, %v1413
        %v1415 = vrot.slane %v1410, 4
        %v1416 = vsel %vm222, 0, %v1415
        %v1417 = vrot.slane %v1414, 4
        %v1418 = vsel %vm222, 0, %v1417
        %v1421 = vunpack.c.l.s4 1983009808
        %v1422 = vunpack.c.0.s8 %v1421
        %v1423 = vperm.slane %v1334, %v1422
        %v1426 = vunpack.c.l.s4 1983009808
        %v1427 = vunpack.c.0.s8 %v1426
        %v1428 = vperm.slane %v1340, %v1427
        %v1429 = vrot.slane %v1428, 4
        %v1430 = vsel %vm222, %v1429, %v1423
        %v1431 = vrot.slane %v1423, 4
        %v1432 = vsel %vm222, %v1428, %v1431
        %v1434 = vunpack.c.l.s4 1934713408
        %v1435 = vunpack.c.0.s8 %v1434
        %v1436 = vperm.slane %v1430, %v1435
        %v1438 = vunpack.c.l.s4 1934713408
        %v1439 = vunpack.c.0.s8 %v1438
        %v1440 = vperm.slane %v1432, %v1439
        %v1441 = vrot.slane %v1436, 4
        %v1442 = vsel %vm222, 0, %v1441
        %v1443 = vrot.slane %v1440, 4
        %v1444 = vsel %vm222, 0, %v1443
        %v1446 = vunpack.c.l.b16 %v1384
        %v1447 = vpack.c.b16 %v1446, %v1446
        %1448 = vrot.lane.b32.xlu0 %v1447, 16
        %v1449 = vpop.permute.xlu0 %1448
        %v1451 = vunpack.c.l.b16 %v1364
        %v1452 = vpack.c.b16 %v1451, %v1451
        %1453 = vrot.lane.b32.xlu0 %v1452, 32
        %v1454 = vpop.permute.xlu0 %1453
        %v1456 = vunpack.c.l.b16 %v1390
        %v1457 = vpack.c.b16 %v1456, %v1456
        %1458 = vrot.lane.b32.xlu0 %v1457, 48
        %v1459 = vpop.permute.xlu0 %1458
        %v1461 = vunpack.c.l.b16 %v1362
        %v1462 = vpack.c.b16 %v1461, %v1461
        %1463 = vrot.lane.b32.xlu0 %v1462, 64
        %v1464 = vpop.permute.xlu0 %1463
        %v1466 = vunpack.c.l.b16 %v1388
        %v1467 = vpack.c.b16 %v1466, %v1466
        %1468 = vrot.lane.b32.xlu0 %v1467, 80
        %v1469 = vpop.permute.xlu0 %1468
        %v1471 = vunpack.c.l.b16 %v1366
        %v1472 = vpack.c.b16 %v1471, %v1471
        %1473 = vrot.lane.b32.xlu0 %v1472, 96
        %v1474 = vpop.permute.xlu0 %1473
        %v1476 = vunpack.c.l.b16 %v1392
        %v1477 = vpack.c.b16 %v1476, %v1476
        %1478 = vrot.lane.b32.xlu0 %v1477, 112
        %v1479 = vpop.permute.xlu0 %1478
        %v1481 = vunpack.c.l.b16 %v1436
        %v1482 = vpack.c.b16 %v1481, %v1481
        %1483 = vrot.lane.b32.xlu0 %v1482, 16
        %v1484 = vpop.permute.xlu0 %1483
        %v1486 = vunpack.c.l.b16 %v1416
        %v1487 = vpack.c.b16 %v1486, %v1486
        %1488 = vrot.lane.b32.xlu0 %v1487, 32
        %v1489 = vpop.permute.xlu0 %1488
        %v1491 = vunpack.c.l.b16 %v1442
        %v1492 = vpack.c.b16 %v1491, %v1491
        %1493 = vrot.lane.b32.xlu0 %v1492, 48
        %v1494 = vpop.permute.xlu0 %1493
        %v1496 = vunpack.c.l.b16 %v1414
        %v1497 = vpack.c.b16 %v1496, %v1496
        %1498 = vrot.lane.b32.xlu0 %v1497, 64
        %v1499 = vpop.permute.xlu0 %1498
        %v1501 = vunpack.c.l.b16 %v1440
        %v1502 = vpack.c.b16 %v1501, %v1501
        %1503 = vrot.lane.b32.xlu0 %v1502, 80
        %v1504 = vpop.permute.xlu0 %1503
        %v1506 = vunpack.c.l.b16 %v1418
        %v1507 = vpack.c.b16 %v1506, %v1506
        %1508 = vrot.lane.b32.xlu0 %v1507, 96
        %v1509 = vpop.permute.xlu0 %1508
        %v1511 = vunpack.c.l.b16 %v1444
        %v1512 = vpack.c.b16 %v1511, %v1511
        %1513 = vrot.lane.b32.xlu0 %v1512, 112
        %v1514 = vpop.permute.xlu0 %1513
        %v1517 = vsel %vm386, %v1358, %v1449
        %v1519 = vsel %vm390, %v1517, %v1454
        %v1521 = vsel %vm393, %v1519, %v1459
        %v1523 = vsel %vm396, %v1521, %v1464
        %v1525 = vsel %vm399, %v1523, %v1469
        %v1527 = vsel %vm402, %v1525, %v1474
        %v1529 = vsel %vm405, %v1527, %v1479
        %v1532 = vsel %vm386, %v1410, %v1484
        %v1534 = vsel %vm390, %v1532, %v1489
        %v1536 = vsel %vm393, %v1534, %v1494
        %v1538 = vsel %vm396, %v1536, %v1499
        %v1540 = vsel %vm399, %v1538, %v1504
        %v1542 = vsel %vm402, %v1540, %v1509
        %v1544 = vsel %vm405, %v1542, %v1514
        %1545 = vrot.lane.b32.xlu0 %v688, 126
        %v1546 = vpop.permute.xlu0 %1545
        %1547 = vrot.lane.b32.xlu0 %v697, 126
        %v1548 = vpop.permute.xlu0 %1547
        %1549 = vrot.lane.b32.xlu0 %v708, 126
        %v1550 = vpop.permute.xlu0 %1549
        %1551 = vrot.lane.b32.xlu0 %v717, 126
        %v1552 = vpop.permute.xlu0 %1551
        %1553 = vrot.lane.b32.xlu0 %v728, 126
        %v1554 = vpop.permute.xlu0 %1553
        %1555 = vrot.lane.b32.xlu0 %v737, 126
        %v1556 = vpop.permute.xlu0 %1555
        %1557 = vrot.lane.b32.xlu0 %v748, 126
        %v1558 = vpop.permute.xlu0 %1557
        %1559 = vrot.lane.b32.xlu0 %v757, 126
        %v1560 = vpop.permute.xlu0 %1559
        %v1563 = vpack.i.b16 %v1550, %v1546
        %v1564 = vshrl.u32 %v1546, 16
        %v1565 = vshrl.u32 %v1550, 16
        %v1566 = vpack.i.b16 %v1565, %v1564
        %v1569 = vpack.i.b16 %v1558, %v1554
        %v1570 = vshrl.u32 %v1554, 16
        %v1571 = vshrl.u32 %v1558, 16
        %v1572 = vpack.i.b16 %v1571, %v1570
        %v1575 = vpack.i.b16 %v1552, %v1548
        %v1576 = vshrl.u32 %v1548, 16
        %v1577 = vshrl.u32 %v1552, 16
        %v1578 = vpack.i.b16 %v1577, %v1576
        %v1581 = vpack.i.b16 %v1560, %v1556
        %v1582 = vshrl.u32 %v1556, 16
        %v1583 = vshrl.u32 %v1560, 16
        %v1584 = vpack.i.b16 %v1583, %v1582
        %v1587 = vunpack.c.l.s4 1983009808
        %v1588 = vunpack.c.0.s8 %v1587
        %v1589 = vperm.slane %v1563, %v1588
        %v1592 = vunpack.c.l.s4 1983009808
        %v1593 = vunpack.c.0.s8 %v1592
        %v1594 = vperm.slane %v1569, %v1593
        %v1595 = vrot.slane %v1594, 4
        %v1596 = vsel %vm222, %v1595, %v1589
        %v1597 = vrot.slane %v1589, 4
        %v1598 = vsel %vm222, %v1594, %v1597
        %v1600 = vunpack.c.l.s4 1934713408
        %v1601 = vunpack.c.0.s8 %v1600
        %v1602 = vperm.slane %v1596, %v1601
        %v1604 = vunpack.c.l.s4 1934713408
        %v1605 = vunpack.c.0.s8 %v1604
        %v1606 = vperm.slane %v1598, %v1605
        %v1607 = vrot.slane %v1602, 4
        %v1608 = vsel %vm222, 0, %v1607
        %v1609 = vrot.slane %v1606, 4
        %v1610 = vsel %vm222, 0, %v1609
        %v1613 = vunpack.c.l.s4 1983009808
        %v1614 = vunpack.c.0.s8 %v1613
        %v1615 = vperm.slane %v1566, %v1614
        %v1618 = vunpack.c.l.s4 1983009808
        %v1619 = vunpack.c.0.s8 %v1618
        %v1620 = vperm.slane %v1572, %v1619
        %v1621 = vrot.slane %v1620, 4
        %v1622 = vsel %vm222, %v1621, %v1615
        %v1623 = vrot.slane %v1615, 4
        %v1624 = vsel %vm222, %v1620, %v1623
        %v1626 = vunpack.c.l.s4 1934713408
        %v1627 = vunpack.c.0.s8 %v1626
        %v1628 = vperm.slane %v1622, %v1627
        %v1630 = vunpack.c.l.s4 1934713408
        %v1631 = vunpack.c.0.s8 %v1630
        %v1632 = vperm.slane %v1624, %v1631
        %v1633 = vrot.slane %v1628, 4
        %v1634 = vsel %vm222, 0, %v1633
        %v1635 = vrot.slane %v1632, 4
        %v1636 = vsel %vm222, 0, %v1635
        %v1639 = vunpack.c.l.s4 1983009808
        %v1640 = vunpack.c.0.s8 %v1639
        %v1641 = vperm.slane %v1575, %v1640
        %v1644 = vunpack.c.l.s4 1983009808
        %v1645 = vunpack.c.0.s8 %v1644
        %v1646 = vperm.slane %v1581, %v1645
        %v1647 = vrot.slane %v1646, 4
        %v1648 = vsel %vm222, %v1647, %v1641
        %v1649 = vrot.slane %v1641, 4
        %v1650 = vsel %vm222, %v1646, %v1649
        %v1652 = vunpack.c.l.s4 1934713408
        %v1653 = vunpack.c.0.s8 %v1652
        %v1654 = vperm.slane %v1648, %v1653
        %v1656 = vunpack.c.l.s4 1934713408
        %v1657 = vunpack.c.0.s8 %v1656
        %v1658 = vperm.slane %v1650, %v1657
        %v1659 = vrot.slane %v1654, 4
        %v1660 = vsel %vm222, 0, %v1659
        %v1661 = vrot.slane %v1658, 4
        %v1662 = vsel %vm222, 0, %v1661
        %v1665 = vunpack.c.l.s4 1983009808
        %v1666 = vunpack.c.0.s8 %v1665
        %v1667 = vperm.slane %v1578, %v1666
        %v1670 = vunpack.c.l.s4 1983009808
        %v1671 = vunpack.c.0.s8 %v1670
        %v1672 = vperm.slane %v1584, %v1671
        %v1673 = vrot.slane %v1672, 4
        %v1674 = vsel %vm222, %v1673, %v1667
        %v1675 = vrot.slane %v1667, 4
        %v1676 = vsel %vm222, %v1672, %v1675
        %v1678 = vunpack.c.l.s4 1934713408
        %v1679 = vunpack.c.0.s8 %v1678
        %v1680 = vperm.slane %v1674, %v1679
        %v1682 = vunpack.c.l.s4 1934713408
        %v1683 = vunpack.c.0.s8 %v1682
        %v1684 = vperm.slane %v1676, %v1683
        %v1685 = vrot.slane %v1680, 4
        %v1686 = vsel %vm222, 0, %v1685
        %v1687 = vrot.slane %v1684, 4
        %v1688 = vsel %vm222, 0, %v1687
        %v1690 = vunpack.c.l.b16 %v1628
        %v1691 = vpack.c.b16 %v1690, %v1690
        %1692 = vrot.lane.b32.xlu0 %v1691, 16
        %v1693 = vpop.permute.xlu0 %1692
        %v1695 = vunpack.c.l.b16 %v1608
        %v1696 = vpack.c.b16 %v1695, %v1695
        %1697 = vrot.lane.b32.xlu0 %v1696, 32
        %v1698 = vpop.permute.xlu0 %1697
        %v1700 = vunpack.c.l.b16 %v1634
        %v1701 = vpack.c.b16 %v1700, %v1700
        %1702 = vrot.lane.b32.xlu0 %v1701, 48
        %v1703 = vpop.permute.xlu0 %1702
        %v1705 = vunpack.c.l.b16 %v1606
        %v1706 = vpack.c.b16 %v1705, %v1705
        %1707 = vrot.lane.b32.xlu0 %v1706, 64
        %v1708 = vpop.permute.xlu0 %1707
        %v1710 = vunpack.c.l.b16 %v1632
        %v1711 = vpack.c.b16 %v1710, %v1710
        %1712 = vrot.lane.b32.xlu0 %v1711, 80
        %v1713 = vpop.permute.xlu0 %1712
        %v1715 = vunpack.c.l.b16 %v1610
        %v1716 = vpack.c.b16 %v1715, %v1715
        %1717 = vrot.lane.b32.xlu0 %v1716, 96
        %v1718 = vpop.permute.xlu0 %1717
        %v1720 = vunpack.c.l.b16 %v1636
        %v1721 = vpack.c.b16 %v1720, %v1720
        %1722 = vrot.lane.b32.xlu0 %v1721, 112
        %v1723 = vpop.permute.xlu0 %1722
        %v1725 = vunpack.c.l.b16 %v1680
        %v1726 = vpack.c.b16 %v1725, %v1725
        %1727 = vrot.lane.b32.xlu0 %v1726, 16
        %v1728 = vpop.permute.xlu0 %1727
        %v1730 = vunpack.c.l.b16 %v1660
        %v1731 = vpack.c.b16 %v1730, %v1730
        %1732 = vrot.lane.b32.xlu0 %v1731, 32
        %v1733 = vpop.permute.xlu0 %1732
        %v1735 = vunpack.c.l.b16 %v1686
        %v1736 = vpack.c.b16 %v1735, %v1735
        %1737 = vrot.lane.b32.xlu0 %v1736, 48
        %v1738 = vpop.permute.xlu0 %1737
        %v1740 = vunpack.c.l.b16 %v1658
        %v1741 = vpack.c.b16 %v1740, %v1740
        %1742 = vrot.lane.b32.xlu0 %v1741, 64
        %v1743 = vpop.permute.xlu0 %1742
        %v1745 = vunpack.c.l.b16 %v1684
        %v1746 = vpack.c.b16 %v1745, %v1745
        %1747 = vrot.lane.b32.xlu0 %v1746, 80
        %v1748 = vpop.permute.xlu0 %1747
        %v1750 = vunpack.c.l.b16 %v1662
        %v1751 = vpack.c.b16 %v1750, %v1750
        %1752 = vrot.lane.b32.xlu0 %v1751, 96
        %v1753 = vpop.permute.xlu0 %1752
        %v1755 = vunpack.c.l.b16 %v1688
        %v1756 = vpack.c.b16 %v1755, %v1755
        %1757 = vrot.lane.b32.xlu0 %v1756, 112
        %v1758 = vpop.permute.xlu0 %1757
        %v1761 = vsel %vm386, %v1602, %v1693
        %v1763 = vsel %vm390, %v1761, %v1698
        %v1765 = vsel %vm393, %v1763, %v1703
        %v1767 = vsel %vm396, %v1765, %v1708
        %v1769 = vsel %vm399, %v1767, %v1713
        %v1771 = vsel %vm402, %v1769, %v1718
        %v1773 = vsel %vm405, %v1771, %v1723
        %v1776 = vsel %vm386, %v1654, %v1728
        %v1778 = vsel %vm390, %v1776, %v1733
        %v1780 = vsel %vm393, %v1778, %v1738
        %v1782 = vsel %vm396, %v1780, %v1743
        %v1784 = vsel %vm399, %v1782, %v1748
        %v1786 = vsel %vm402, %v1784, %v1753
        %v1788 = vsel %vm405, %v1786, %v1758
        %v1791 = vrot.slane %v1529, 6
        %v1792 = vrot.slane %v1544, 6
        %v1793 = vrot.slane %v1214, 4
        %v1794 = vrot.slane %v1229, 4
        %v1797 = vrot.slane %v1773, 2
        %v1798 = vrot.slane %v1788, 2
        %v1800 = vsel %vm1242, %v659, %v1791
        %v1802 = vsel %vm1242, %v674, %v1792
        %v1804 = vsel %vm1247, %v1800, %v1793
        %v1806 = vsel %vm1247, %v1802, %v1794
        %v1808 = vsel %vm1252, %v1804, %v1797
        %v1811 = vsel %vm1252, %v1806, %v1798
        %s1813 = scalar_lea.vmem %s1, 4
        %v1814 = vld [vmem:[%s1813] sm:$0xf]
        %v1816 = vsel %vm386, %v1814, 0
        %1818 = vmatpush.bf16.msra.mxu0 0
        %1819 = vmatpush.bf16.msra.mxu0 0
        %1820 = vmatpush.bf16.msra.mxu0 0
        %1821 = vmatpush.bf16.msra.mxu0 0
        %1822 = vmatpush.bf16.msra.mxu0 0
        %1823 = vmatpush.bf16.msra.mxu0 0
        %1824 = vmatpush.bf16.msra.mxu0 0
        %1825 = vmatpush.bf16.msra.mxu0 %v1808
        %1826 = vmatmul.bf16.gmra.mxu0 %v1816
        %v1827 = vpop.f32.mrf.mxu0
        %v1828 = vadd.f32 0.0, %v1827
        %v1829 = vpop.f32.mrf.mxu0
        %1830 = vdwg.mxu0
        %1831 = vmatpush.bf16.msra.mxu0 0
        %1832 = vmatpush.bf16.msra.mxu0 0
        %1833 = vmatpush.bf16.msra.mxu0 0
        %1834 = vmatpush.bf16.msra.mxu0 0
        %1835 = vmatpush.bf16.msra.mxu0 0
        %1836 = vmatpush.bf16.msra.mxu0 0
        %1837 = vmatpush.bf16.msra.mxu0 0
        %1838 = vmatpush.bf16.msra.mxu0 %v1811
        %1839 = vmatmul.bf16.gmra.mxu0 %v1816
        %v1840 = vpop.f32.mrf.mxu0
        %v1841 = vadd.f32 0.0, %v1840
        %v1842 = vpop.f32.mrf.mxu0
        %1843 = vdwg.mxu0
        %s1844 = scalar_lea.vmem %s160, 16 [#allocation2]
        %1845 = vst [vmem:[%s1844] sm:$0xff] %v1828
        %1846 = vst [vmem:[%s1844 + $0x8] sm:$0xff] %v1841
        %v1847 = vadd.f32 %v1828, %v1841
        %1848 = vadd.xlane.f32.xlu0 %v1847
        %v1849 = vpop.xlane.xlu0 %1848
        %v1850 = vadd.f32 %v1294, %v1849
        %v1851 = vmul.f32 %v1828, %v1828
        %v1852 = vmul.f32 %v1841, %v1841
        %v1853 = vadd.f32 %v1851, %v1852
        %1854 = vadd.xlane.f32.xlu0 %v1853
        %v1855 = vpop.xlane.xlu0 %1854
        %v1856 = vadd.f32 %v1300, %v1855
        %vm1861 = vcmask 1042432
        %vm1862 = vcmask 1046532
        %vm1863 = vmor %vm1861, %vm1862
        %v1864 = vrot.slane %v175, 5
        %v1865 = vrot.slane %v1864, 4
        %v1866 = vrot.slane %v176, 5
        %v1867 = vsel %vm1863, %v1865, %v1866
        %v1868 = vrot.slane %v1866, 4
        %v1869 = vrot.slane %v177, 5
        %v1870 = vsel %vm1863, %v1868, %v1869
        %v1871 = vrot.slane %v178, 5
        %v1872 = vrot.slane %v1871, 4
        %v1873 = vrot.slane %v179, 5
        %v1874 = vsel %vm1863, %v1872, %v1873
        %v1875 = vrot.slane %v1873, 4
        %v1876 = vrot.slane %v180, 5
        %v1877 = vsel %vm1863, %v1875, %v1876
        %v1878 = vrot.slane %v181, 5
        %v1879 = vrot.slane %v1878, 4
        %v1880 = vrot.slane %v182, 5
        %v1881 = vsel %vm1863, %v1879, %v1880
        %v1882 = vrot.slane %v1880, 4
        %v1883 = vrot.slane %v183, 5
        %v1884 = vsel %vm1863, %v1882, %v1883
        %v1885 = vrot.slane %v184, 5
        %v1886 = vrot.slane %v1885, 4
        %v1887 = vrot.slane %v185, 5
        %v1888 = vsel %vm1863, %v1886, %v1887
        %v1889 = vrot.slane %v1887, 4
        %v1890 = vrot.slane %v186, 5
        %v1891 = vsel %vm1863, %v1889, %v1890
        %v1894 = vpack.i.b16 %v1874, %v1867
        %v1895 = vshrl.u32 %v1867, 16
        %v1896 = vshrl.u32 %v1874, 16
        %v1897 = vpack.i.b16 %v1896, %v1895
        %v1900 = vpack.i.b16 %v1888, %v1881
        %v1901 = vshrl.u32 %v1881, 16
        %v1902 = vshrl.u32 %v1888, 16
        %v1903 = vpack.i.b16 %v1902, %v1901
        %v1906 = vpack.i.b16 %v1877, %v1870
        %v1907 = vshrl.u32 %v1870, 16
        %v1908 = vshrl.u32 %v1877, 16
        %v1909 = vpack.i.b16 %v1908, %v1907
        %v1912 = vpack.i.b16 %v1891, %v1884
        %v1913 = vshrl.u32 %v1884, 16
        %v1914 = vshrl.u32 %v1891, 16
        %v1915 = vpack.i.b16 %v1914, %v1913
        %v1918 = vunpack.c.l.s4 1983009808
        %v1919 = vunpack.c.0.s8 %v1918
        %v1920 = vperm.slane %v1894, %v1919
        %v1923 = vunpack.c.l.s4 1983009808
        %v1924 = vunpack.c.0.s8 %v1923
        %v1925 = vperm.slane %v1900, %v1924
        %v1926 = vrot.slane %v1925, 4
        %v1927 = vsel %vm222, %v1926, %v1920
        %v1928 = vrot.slane %v1920, 4
        %v1929 = vsel %vm222, %v1925, %v1928
        %v1931 = vunpack.c.l.s4 1934713408
        %v1932 = vunpack.c.0.s8 %v1931
        %v1933 = vperm.slane %v1927, %v1932
        %v1935 = vunpack.c.l.s4 1934713408
        %v1936 = vunpack.c.0.s8 %v1935
        %v1937 = vperm.slane %v1929, %v1936
        %v1938 = vrot.slane %v1933, 4
        %v1939 = vsel %vm222, 0, %v1938
        %v1940 = vrot.slane %v1937, 4
        %v1941 = vsel %vm222, 0, %v1940
        %v1944 = vunpack.c.l.s4 1983009808
        %v1945 = vunpack.c.0.s8 %v1944
        %v1946 = vperm.slane %v1897, %v1945
        %v1949 = vunpack.c.l.s4 1983009808
        %v1950 = vunpack.c.0.s8 %v1949
        %v1951 = vperm.slane %v1903, %v1950
        %v1952 = vrot.slane %v1951, 4
        %v1953 = vsel %vm222, %v1952, %v1946
        %v1954 = vrot.slane %v1946, 4
        %v1955 = vsel %vm222, %v1951, %v1954
        %v1957 = vunpack.c.l.s4 1934713408
        %v1958 = vunpack.c.0.s8 %v1957
        %v1959 = vperm.slane %v1953, %v1958
        %v1961 = vunpack.c.l.s4 1934713408
        %v1962 = vunpack.c.0.s8 %v1961
        %v1963 = vperm.slane %v1955, %v1962
        %v1964 = vrot.slane %v1959, 4
        %v1965 = vsel %vm222, 0, %v1964
        %v1966 = vrot.slane %v1963, 4
        %v1967 = vsel %vm222, 0, %v1966
        %v1970 = vunpack.c.l.s4 1983009808
        %v1971 = vunpack.c.0.s8 %v1970
        %v1972 = vperm.slane %v1906, %v1971
        %v1975 = vunpack.c.l.s4 1983009808
        %v1976 = vunpack.c.0.s8 %v1975
        %v1977 = vperm.slane %v1912, %v1976
        %v1978 = vrot.slane %v1977, 4
        %v1979 = vsel %vm222, %v1978, %v1972
        %v1980 = vrot.slane %v1972, 4
        %v1981 = vsel %vm222, %v1977, %v1980
        %v1983 = vunpack.c.l.s4 1934713408
        %v1984 = vunpack.c.0.s8 %v1983
        %v1985 = vperm.slane %v1979, %v1984
        %v1987 = vunpack.c.l.s4 1934713408
        %v1988 = vunpack.c.0.s8 %v1987
        %v1989 = vperm.slane %v1981, %v1988
        %v1990 = vrot.slane %v1985, 4
        %v1991 = vsel %vm222, 0, %v1990
        %v1992 = vrot.slane %v1989, 4
        %v1993 = vsel %vm222, 0, %v1992
        %v1996 = vunpack.c.l.s4 1983009808
        %v1997 = vunpack.c.0.s8 %v1996
        %v1998 = vperm.slane %v1909, %v1997
        %v2001 = vunpack.c.l.s4 1983009808
        %v2002 = vunpack.c.0.s8 %v2001
        %v2003 = vperm.slane %v1915, %v2002
        %v2004 = vrot.slane %v2003, 4
        %v2005 = vsel %vm222, %v2004, %v1998
        %v2006 = vrot.slane %v1998, 4
        %v2007 = vsel %vm222, %v2003, %v2006
        %v2009 = vunpack.c.l.s4 1934713408
        %v2010 = vunpack.c.0.s8 %v2009
        %v2011 = vperm.slane %v2005, %v2010
        %v2013 = vunpack.c.l.s4 1934713408
        %v2014 = vunpack.c.0.s8 %v2013
        %v2015 = vperm.slane %v2007, %v2014
        %v2016 = vrot.slane %v2011, 4
        %v2017 = vsel %vm222, 0, %v2016
        %v2018 = vrot.slane %v2015, 4
        %v2019 = vsel %vm222, 0, %v2018
        %v2021 = vunpack.c.l.b16 %v1959
        %v2022 = vpack.c.b16 %v2021, %v2021
        %2023 = vrot.lane.b32.xlu0 %v2022, 16
        %v2024 = vpop.permute.xlu0 %2023
        %v2026 = vunpack.c.l.b16 %v1939
        %v2027 = vpack.c.b16 %v2026, %v2026
        %2028 = vrot.lane.b32.xlu0 %v2027, 32
        %v2029 = vpop.permute.xlu0 %2028
        %v2031 = vunpack.c.l.b16 %v1965
        %v2032 = vpack.c.b16 %v2031, %v2031
        %2033 = vrot.lane.b32.xlu0 %v2032, 48
        %v2034 = vpop.permute.xlu0 %2033
        %v2036 = vunpack.c.l.b16 %v1937
        %v2037 = vpack.c.b16 %v2036, %v2036
        %2038 = vrot.lane.b32.xlu0 %v2037, 64
        %v2039 = vpop.permute.xlu0 %2038
        %v2041 = vunpack.c.l.b16 %v1963
        %v2042 = vpack.c.b16 %v2041, %v2041
        %2043 = vrot.lane.b32.xlu0 %v2042, 80
        %v2044 = vpop.permute.xlu0 %2043
        %v2046 = vunpack.c.l.b16 %v1941
        %v2047 = vpack.c.b16 %v2046, %v2046
        %2048 = vrot.lane.b32.xlu0 %v2047, 96
        %v2049 = vpop.permute.xlu0 %2048
        %v2051 = vunpack.c.l.b16 %v1967
        %v2052 = vpack.c.b16 %v2051, %v2051
        %2053 = vrot.lane.b32.xlu0 %v2052, 112
        %v2054 = vpop.permute.xlu0 %2053
        %v2056 = vunpack.c.l.b16 %v2011
        %v2057 = vpack.c.b16 %v2056, %v2056
        %2058 = vrot.lane.b32.xlu0 %v2057, 16
        %v2059 = vpop.permute.xlu0 %2058
        %v2061 = vunpack.c.l.b16 %v1991
        %v2062 = vpack.c.b16 %v2061, %v2061
        %2063 = vrot.lane.b32.xlu0 %v2062, 32
        %v2064 = vpop.permute.xlu0 %2063
        %v2066 = vunpack.c.l.b16 %v2017
        %v2067 = vpack.c.b16 %v2066, %v2066
        %2068 = vrot.lane.b32.xlu0 %v2067, 48
        %v2069 = vpop.permute.xlu0 %2068
        %v2071 = vunpack.c.l.b16 %v1989
        %v2072 = vpack.c.b16 %v2071, %v2071
        %2073 = vrot.lane.b32.xlu0 %v2072, 64
        %v2074 = vpop.permute.xlu0 %2073
        %v2076 = vunpack.c.l.b16 %v2015
        %v2077 = vpack.c.b16 %v2076, %v2076
        %2078 = vrot.lane.b32.xlu0 %v2077, 80
        %v2079 = vpop.permute.xlu0 %2078
        %v2081 = vunpack.c.l.b16 %v1993
        %v2082 = vpack.c.b16 %v2081, %v2081
        %2083 = vrot.lane.b32.xlu0 %v2082, 96
        %v2084 = vpop.permute.xlu0 %2083
        %v2086 = vunpack.c.l.b16 %v2019
        %v2087 = vpack.c.b16 %v2086, %v2086
        %2088 = vrot.lane.b32.xlu0 %v2087, 112
        %v2089 = vpop.permute.xlu0 %2088
        %v2092 = vsel %vm386, %v1933, %v2024
        %v2094 = vsel %vm390, %v2092, %v2029
        %v2096 = vsel %vm393, %v2094, %v2034
        %v2098 = vsel %vm396, %v2096, %v2039
        %v2100 = vsel %vm399, %v2098, %v2044
        %v2102 = vsel %vm402, %v2100, %v2049
        %v2104 = vsel %vm405, %v2102, %v2054
        %v2107 = vsel %vm386, %v1985, %v2059
        %v2109 = vsel %vm390, %v2107, %v2064
        %v2111 = vsel %vm393, %v2109, %v2069
        %v2113 = vsel %vm396, %v2111, %v2074
        %v2115 = vsel %vm399, %v2113, %v2079
        %v2117 = vsel %vm402, %v2115, %v2084
        %v2119 = vsel %vm405, %v2117, %v2089
        %2120 = vrot.lane.b32.xlu0 %v1867, 127
        %v2121 = vpop.permute.xlu0 %2120
        %2122 = vrot.lane.b32.xlu0 %v1870, 127
        %v2123 = vpop.permute.xlu0 %2122
        %2124 = vrot.lane.b32.xlu0 %v1874, 127
        %v2125 = vpop.permute.xlu0 %2124
        %2126 = vrot.lane.b32.xlu0 %v1877, 127
        %v2127 = vpop.permute.xlu0 %2126
        %2128 = vrot.lane.b32.xlu0 %v1881, 127
        %v2129 = vpop.permute.xlu0 %2128
        %2130 = vrot.lane.b32.xlu0 %v1884, 127
        %v2131 = vpop.permute.xlu0 %2130
        %2132 = vrot.lane.b32.xlu0 %v1888, 127
        %v2133 = vpop.permute.xlu0 %2132
        %2134 = vrot.lane.b32.xlu0 %v1891, 127
        %v2135 = vpop.permute.xlu0 %2134
        %v2138 = vpack.i.b16 %v2125, %v2121
        %v2139 = vshrl.u32 %v2121, 16
        %v2140 = vshrl.u32 %v2125, 16
        %v2141 = vpack.i.b16 %v2140, %v2139
        %v2144 = vpack.i.b16 %v2133, %v2129
        %v2145 = vshrl.u32 %v2129, 16
        %v2146 = vshrl.u32 %v2133, 16
        %v2147 = vpack.i.b16 %v2146, %v2145
        %v2150 = vpack.i.b16 %v2127, %v2123
        %v2151 = vshrl.u32 %v2123, 16
        %v2152 = vshrl.u32 %v2127, 16
        %v2153 = vpack.i.b16 %v2152, %v2151
        %v2156 = vpack.i.b16 %v2135, %v2131
        %v2157 = vshrl.u32 %v2131, 16
        %v2158 = vshrl.u32 %v2135, 16
        %v2159 = vpack.i.b16 %v2158, %v2157
        %v2162 = vunpack.c.l.s4 1983009808
        %v2163 = vunpack.c.0.s8 %v2162
        %v2164 = vperm.slane %v2138, %v2163
        %v2167 = vunpack.c.l.s4 1983009808
        %v2168 = vunpack.c.0.s8 %v2167
        %v2169 = vperm.slane %v2144, %v2168
        %v2170 = vrot.slane %v2169, 4
        %v2171 = vsel %vm222, %v2170, %v2164
        %v2172 = vrot.slane %v2164, 4
        %v2173 = vsel %vm222, %v2169, %v2172
        %v2175 = vunpack.c.l.s4 1934713408
        %v2176 = vunpack.c.0.s8 %v2175
        %v2177 = vperm.slane %v2171, %v2176
        %v2179 = vunpack.c.l.s4 1934713408
        %v2180 = vunpack.c.0.s8 %v2179
        %v2181 = vperm.slane %v2173, %v2180
        %v2182 = vrot.slane %v2177, 4
        %v2183 = vsel %vm222, 0, %v2182
        %v2184 = vrot.slane %v2181, 4
        %v2185 = vsel %vm222, 0, %v2184
        %v2188 = vunpack.c.l.s4 1983009808
        %v2189 = vunpack.c.0.s8 %v2188
        %v2190 = vperm.slane %v2141, %v2189
        %v2193 = vunpack.c.l.s4 1983009808
        %v2194 = vunpack.c.0.s8 %v2193
        %v2195 = vperm.slane %v2147, %v2194
        %v2196 = vrot.slane %v2195, 4
        %v2197 = vsel %vm222, %v2196, %v2190
        %v2198 = vrot.slane %v2190, 4
        %v2199 = vsel %vm222, %v2195, %v2198
        %v2201 = vunpack.c.l.s4 1934713408
        %v2202 = vunpack.c.0.s8 %v2201
        %v2203 = vperm.slane %v2197, %v2202
        %v2205 = vunpack.c.l.s4 1934713408
        %v2206 = vunpack.c.0.s8 %v2205
        %v2207 = vperm.slane %v2199, %v2206
        %v2208 = vrot.slane %v2203, 4
        %v2209 = vsel %vm222, 0, %v2208
        %v2210 = vrot.slane %v2207, 4
        %v2211 = vsel %vm222, 0, %v2210
        %v2214 = vunpack.c.l.s4 1983009808
        %v2215 = vunpack.c.0.s8 %v2214
        %v2216 = vperm.slane %v2150, %v2215
        %v2219 = vunpack.c.l.s4 1983009808
        %v2220 = vunpack.c.0.s8 %v2219
        %v2221 = vperm.slane %v2156, %v2220
        %v2222 = vrot.slane %v2221, 4
        %v2223 = vsel %vm222, %v2222, %v2216
        %v2224 = vrot.slane %v2216, 4
        %v2225 = vsel %vm222, %v2221, %v2224
        %v2227 = vunpack.c.l.s4 1934713408
        %v2228 = vunpack.c.0.s8 %v2227
        %v2229 = vperm.slane %v2223, %v2228
        %v2231 = vunpack.c.l.s4 1934713408
        %v2232 = vunpack.c.0.s8 %v2231
        %v2233 = vperm.slane %v2225, %v2232
        %v2234 = vrot.slane %v2229, 4
        %v2235 = vsel %vm222, 0, %v2234
        %v2236 = vrot.slane %v2233, 4
        %v2237 = vsel %vm222, 0, %v2236
        %v2240 = vunpack.c.l.s4 1983009808
        %v2241 = vunpack.c.0.s8 %v2240
        %v2242 = vperm.slane %v2153, %v2241
        %v2245 = vunpack.c.l.s4 1983009808
        %v2246 = vunpack.c.0.s8 %v2245
        %v2247 = vperm.slane %v2159, %v2246
        %v2248 = vrot.slane %v2247, 4
        %v2249 = vsel %vm222, %v2248, %v2242
        %v2250 = vrot.slane %v2242, 4
        %v2251 = vsel %vm222, %v2247, %v2250
        %v2253 = vunpack.c.l.s4 1934713408
        %v2254 = vunpack.c.0.s8 %v2253
        %v2255 = vperm.slane %v2249, %v2254
        %v2257 = vunpack.c.l.s4 1934713408
        %v2258 = vunpack.c.0.s8 %v2257
        %v2259 = vperm.slane %v2251, %v2258
        %v2260 = vrot.slane %v2255, 4
        %v2261 = vsel %vm222, 0, %v2260
        %v2262 = vrot.slane %v2259, 4
        %v2263 = vsel %vm222, 0, %v2262
        %v2265 = vunpack.c.l.b16 %v2203
        %v2266 = vpack.c.b16 %v2265, %v2265
        %2267 = vrot.lane.b32.xlu0 %v2266, 16
        %v2268 = vpop.permute.xlu0 %2267
        %v2270 = vunpack.c.l.b16 %v2183
        %v2271 = vpack.c.b16 %v2270, %v2270
        %2272 = vrot.lane.b32.xlu0 %v2271, 32
        %v2273 = vpop.permute.xlu0 %2272
        %v2275 = vunpack.c.l.b16 %v2209
        %v2276 = vpack.c.b16 %v2275, %v2275
        %2277 = vrot.lane.b32.xlu0 %v2276, 48
        %v2278 = vpop.permute.xlu0 %2277
        %v2280 = vunpack.c.l.b16 %v2181
        %v2281 = vpack.c.b16 %v2280, %v2280
        %2282 = vrot.lane.b32.xlu0 %v2281, 64
        %v2283 = vpop.permute.xlu0 %2282
        %v2285 = vunpack.c.l.b16 %v2207
        %v2286 = vpack.c.b16 %v2285, %v2285
        %2287 = vrot.lane.b32.xlu0 %v2286, 80
        %v2288 = vpop.permute.xlu0 %2287
        %v2290 = vunpack.c.l.b16 %v2185
        %v2291 = vpack.c.b16 %v2290, %v2290
        %2292 = vrot.lane.b32.xlu0 %v2291, 96
        %v2293 = vpop.permute.xlu0 %2292
        %v2295 = vunpack.c.l.b16 %v2211
        %v2296 = vpack.c.b16 %v2295, %v2295
        %2297 = vrot.lane.b32.xlu0 %v2296, 112
        %v2298 = vpop.permute.xlu0 %2297
        %v2300 = vunpack.c.l.b16 %v2255
        %v2301 = vpack.c.b16 %v2300, %v2300
        %2302 = vrot.lane.b32.xlu0 %v2301, 16
        %v2303 = vpop.permute.xlu0 %2302
        %v2305 = vunpack.c.l.b16 %v2235
        %v2306 = vpack.c.b16 %v2305, %v2305
        %2307 = vrot.lane.b32.xlu0 %v2306, 32
        %v2308 = vpop.permute.xlu0 %2307
        %v2310 = vunpack.c.l.b16 %v2261
        %v2311 = vpack.c.b16 %v2310, %v2310
        %2312 = vrot.lane.b32.xlu0 %v2311, 48
        %v2313 = vpop.permute.xlu0 %2312
        %v2315 = vunpack.c.l.b16 %v2233
        %v2316 = vpack.c.b16 %v2315, %v2315
        %2317 = vrot.lane.b32.xlu0 %v2316, 64
        %v2318 = vpop.permute.xlu0 %2317
        %v2320 = vunpack.c.l.b16 %v2259
        %v2321 = vpack.c.b16 %v2320, %v2320
        %2322 = vrot.lane.b32.xlu0 %v2321, 80
        %v2323 = vpop.permute.xlu0 %2322
        %v2325 = vunpack.c.l.b16 %v2237
        %v2326 = vpack.c.b16 %v2325, %v2325
        %2327 = vrot.lane.b32.xlu0 %v2326, 96
        %v2328 = vpop.permute.xlu0 %2327
        %v2330 = vunpack.c.l.b16 %v2263
        %v2331 = vpack.c.b16 %v2330, %v2330
        %2332 = vrot.lane.b32.xlu0 %v2331, 112
        %v2333 = vpop.permute.xlu0 %2332
        %v2336 = vsel %vm386, %v2177, %v2268
        %v2338 = vsel %vm390, %v2336, %v2273
        %v2340 = vsel %vm393, %v2338, %v2278
        %v2342 = vsel %vm396, %v2340, %v2283
        %v2344 = vsel %vm399, %v2342, %v2288
        %v2346 = vsel %vm402, %v2344, %v2293
        %v2348 = vsel %vm405, %v2346, %v2298
        %v2351 = vsel %vm386, %v2229, %v2303
        %v2353 = vsel %vm390, %v2351, %v2308
        %v2355 = vsel %vm393, %v2353, %v2313
        %v2357 = vsel %vm396, %v2355, %v2318
        %v2359 = vsel %vm399, %v2357, %v2323
        %v2361 = vsel %vm402, %v2359, %v2328
        %v2363 = vsel %vm405, %v2361, %v2333
        %v2364 = vrot.slane %v1214, 6
        %v2365 = vrot.slane %v1229, 6
        %v2368 = vrot.slane %v2104, 4
        %v2369 = vrot.slane %v2119, 4
        %v2372 = vrot.slane %v2348, 2
        %v2373 = vrot.slane %v2363, 2
        %v2375 = vsel %vm1242, %v970, %v2364
        %v2377 = vsel %vm1242, %v985, %v2365
        %v2379 = vsel %vm1247, %v2375, %v2368
        %v2381 = vsel %vm1247, %v2377, %v2369
        %v2383 = vsel %vm1252, %v2379, %v2372
        %v2386 = vsel %vm1252, %v2381, %v2373
        %s2388 = scalar_lea.vmem %s1, 8
        %v2389 = vld [vmem:[%s2388] sm:$0xf]
        %v2391 = vsel %vm386, %v2389, 0
        %2393 = vmatpush.bf16.msra.mxu0 0
        %2394 = vmatpush.bf16.msra.mxu0 0
        %2395 = vmatpush.bf16.msra.mxu0 0
        %2396 = vmatpush.bf16.msra.mxu0 0
        %2397 = vmatpush.bf16.msra.mxu0 0
        %2398 = vmatpush.bf16.msra.mxu0 0
        %2399 = vmatpush.bf16.msra.mxu0 0
        %2400 = vmatpush.bf16.msra.mxu0 %v2383
        %2401 = vmatmul.bf16.gmra.mxu0 %v2391
        %v2402 = vpop.f32.mrf.mxu0
        %v2403 = vadd.f32 0.0, %v2402
        %v2404 = vpop.f32.mrf.mxu0
        %2405 = vdwg.mxu0
        %2406 = vmatpush.bf16.msra.mxu0 0
        %2407 = vmatpush.bf16.msra.mxu0 0
        %2408 = vmatpush.bf16.msra.mxu0 0
        %2409 = vmatpush.bf16.msra.mxu0 0
        %2410 = vmatpush.bf16.msra.mxu0 0
        %2411 = vmatpush.bf16.msra.mxu0 0
        %2412 = vmatpush.bf16.msra.mxu0 0
        %2413 = vmatpush.bf16.msra.mxu0 %v2386
        %2414 = vmatmul.bf16.gmra.mxu0 %v2391
        %v2415 = vpop.f32.mrf.mxu0
        %v2416 = vadd.f32 0.0, %v2415
        %v2417 = vpop.f32.mrf.mxu0
        %2418 = vdwg.mxu0
        %s2419 = scalar_lea.vmem %s160, 32 [#allocation2]
        %2420 = vst [vmem:[%s2419] sm:$0xff] %v2403
        %2421 = vst [vmem:[%s2419 + $0x8] sm:$0xff] %v2416
        %v2422 = vadd.f32 %v2403, %v2416
        %2423 = vadd.xlane.f32.xlu0 %v2422
        %v2424 = vpop.xlane.xlu0 %2423
        %v2425 = vadd.f32 %v1850, %v2424
        %v2426 = vmul.f32 %v2403, %v2403
        %v2427 = vmul.f32 %v2416, %v2416
        %v2428 = vadd.f32 %v2426, %v2427
        %2429 = vadd.xlane.f32.xlu0 %v2428
        %v2430 = vpop.xlane.xlu0 %2429
        %v2431 = vadd.f32 %v1856, %v2430
        %2432 = vrot.lane.b32.xlu0 %v1867, 126
        %v2433 = vpop.permute.xlu0 %2432
        %2434 = vrot.lane.b32.xlu0 %v1870, 126
        %v2435 = vpop.permute.xlu0 %2434
        %2436 = vrot.lane.b32.xlu0 %v1874, 126
        %v2437 = vpop.permute.xlu0 %2436
        %2438 = vrot.lane.b32.xlu0 %v1877, 126
        %v2439 = vpop.permute.xlu0 %2438
        %2440 = vrot.lane.b32.xlu0 %v1881, 126
        %v2441 = vpop.permute.xlu0 %2440
        %2442 = vrot.lane.b32.xlu0 %v1884, 126
        %v2443 = vpop.permute.xlu0 %2442
        %2444 = vrot.lane.b32.xlu0 %v1888, 126
        %v2445 = vpop.permute.xlu0 %2444
        %2446 = vrot.lane.b32.xlu0 %v1891, 126
        %v2447 = vpop.permute.xlu0 %2446
        %v2450 = vpack.i.b16 %v2437, %v2433
        %v2451 = vshrl.u32 %v2433, 16
        %v2452 = vshrl.u32 %v2437, 16
        %v2453 = vpack.i.b16 %v2452, %v2451
        %v2456 = vpack.i.b16 %v2445, %v2441
        %v2457 = vshrl.u32 %v2441, 16
        %v2458 = vshrl.u32 %v2445, 16
        %v2459 = vpack.i.b16 %v2458, %v2457
        %v2462 = vpack.i.b16 %v2439, %v2435
        %v2463 = vshrl.u32 %v2435, 16
        %v2464 = vshrl.u32 %v2439, 16
        %v2465 = vpack.i.b16 %v2464, %v2463
        %v2468 = vpack.i.b16 %v2447, %v2443
        %v2469 = vshrl.u32 %v2443, 16
        %v2470 = vshrl.u32 %v2447, 16
        %v2471 = vpack.i.b16 %v2470, %v2469
        %v2474 = vunpack.c.l.s4 1983009808
        %v2475 = vunpack.c.0.s8 %v2474
        %v2476 = vperm.slane %v2450, %v2475
        %v2479 = vunpack.c.l.s4 1983009808
        %v2480 = vunpack.c.0.s8 %v2479
        %v2481 = vperm.slane %v2456, %v2480
        %v2482 = vrot.slane %v2481, 4
        %v2483 = vsel %vm222, %v2482, %v2476
        %v2484 = vrot.slane %v2476, 4
        %v2485 = vsel %vm222, %v2481, %v2484
        %v2487 = vunpack.c.l.s4 1934713408
        %v2488 = vunpack.c.0.s8 %v2487
        %v2489 = vperm.slane %v2483, %v2488
        %v2491 = vunpack.c.l.s4 1934713408
        %v2492 = vunpack.c.0.s8 %v2491
        %v2493 = vperm.slane %v2485, %v2492
        %v2494 = vrot.slane %v2489, 4
        %v2495 = vsel %vm222, 0, %v2494
        %v2496 = vrot.slane %v2493, 4
        %v2497 = vsel %vm222, 0, %v2496
        %v2500 = vunpack.c.l.s4 1983009808
        %v2501 = vunpack.c.0.s8 %v2500
        %v2502 = vperm.slane %v2453, %v2501
        %v2505 = vunpack.c.l.s4 1983009808
        %v2506 = vunpack.c.0.s8 %v2505
        %v2507 = vperm.slane %v2459, %v2506
        %v2508 = vrot.slane %v2507, 4
        %v2509 = vsel %vm222, %v2508, %v2502
        %v2510 = vrot.slane %v2502, 4
        %v2511 = vsel %vm222, %v2507, %v2510
        %v2513 = vunpack.c.l.s4 1934713408
        %v2514 = vunpack.c.0.s8 %v2513
        %v2515 = vperm.slane %v2509, %v2514
        %v2517 = vunpack.c.l.s4 1934713408
        %v2518 = vunpack.c.0.s8 %v2517
        %v2519 = vperm.slane %v2511, %v2518
        %v2520 = vrot.slane %v2515, 4
        %v2521 = vsel %vm222, 0, %v2520
        %v2522 = vrot.slane %v2519, 4
        %v2523 = vsel %vm222, 0, %v2522
        %v2526 = vunpack.c.l.s4 1983009808
        %v2527 = vunpack.c.0.s8 %v2526
        %v2528 = vperm.slane %v2462, %v2527
        %v2531 = vunpack.c.l.s4 1983009808
        %v2532 = vunpack.c.0.s8 %v2531
        %v2533 = vperm.slane %v2468, %v2532
        %v2534 = vrot.slane %v2533, 4
        %v2535 = vsel %vm222, %v2534, %v2528
        %v2536 = vrot.slane %v2528, 4
        %v2537 = vsel %vm222, %v2533, %v2536
        %v2539 = vunpack.c.l.s4 1934713408
        %v2540 = vunpack.c.0.s8 %v2539
        %v2541 = vperm.slane %v2535, %v2540
        %v2543 = vunpack.c.l.s4 1934713408
        %v2544 = vunpack.c.0.s8 %v2543
        %v2545 = vperm.slane %v2537, %v2544
        %v2546 = vrot.slane %v2541, 4
        %v2547 = vsel %vm222, 0, %v2546
        %v2548 = vrot.slane %v2545, 4
        %v2549 = vsel %vm222, 0, %v2548
        %v2552 = vunpack.c.l.s4 1983009808
        %v2553 = vunpack.c.0.s8 %v2552
        %v2554 = vperm.slane %v2465, %v2553
        %v2557 = vunpack.c.l.s4 1983009808
        %v2558 = vunpack.c.0.s8 %v2557
        %v2559 = vperm.slane %v2471, %v2558
        %v2560 = vrot.slane %v2559, 4
        %v2561 = vsel %vm222, %v2560, %v2554
        %v2562 = vrot.slane %v2554, 4
        %v2563 = vsel %vm222, %v2559, %v2562
        %v2565 = vunpack.c.l.s4 1934713408
        %v2566 = vunpack.c.0.s8 %v2565
        %v2567 = vperm.slane %v2561, %v2566
        %v2569 = vunpack.c.l.s4 1934713408
        %v2570 = vunpack.c.0.s8 %v2569
        %v2571 = vperm.slane %v2563, %v2570
        %v2572 = vrot.slane %v2567, 4
        %v2573 = vsel %vm222, 0, %v2572
        %v2574 = vrot.slane %v2571, 4
        %v2575 = vsel %vm222, 0, %v2574
        %v2577 = vunpack.c.l.b16 %v2515
        %v2578 = vpack.c.b16 %v2577, %v2577
        %2579 = vrot.lane.b32.xlu0 %v2578, 16
        %v2580 = vpop.permute.xlu0 %2579
        %v2582 = vunpack.c.l.b16 %v2495
        %v2583 = vpack.c.b16 %v2582, %v2582
        %2584 = vrot.lane.b32.xlu0 %v2583, 32
        %v2585 = vpop.permute.xlu0 %2584
        %v2587 = vunpack.c.l.b16 %v2521
        %v2588 = vpack.c.b16 %v2587, %v2587
        %2589 = vrot.lane.b32.xlu0 %v2588, 48
        %v2590 = vpop.permute.xlu0 %2589
        %v2592 = vunpack.c.l.b16 %v2493
        %v2593 = vpack.c.b16 %v2592, %v2592
        %2594 = vrot.lane.b32.xlu0 %v2593, 64
        %v2595 = vpop.permute.xlu0 %2594
        %v2597 = vunpack.c.l.b16 %v2519
        %v2598 = vpack.c.b16 %v2597, %v2597
        %2599 = vrot.lane.b32.xlu0 %v2598, 80
        %v2600 = vpop.permute.xlu0 %2599
        %v2602 = vunpack.c.l.b16 %v2497
        %v2603 = vpack.c.b16 %v2602, %v2602
        %2604 = vrot.lane.b32.xlu0 %v2603, 96
        %v2605 = vpop.permute.xlu0 %2604
        %v2607 = vunpack.c.l.b16 %v2523
        %v2608 = vpack.c.b16 %v2607, %v2607
        %2609 = vrot.lane.b32.xlu0 %v2608, 112
        %v2610 = vpop.permute.xlu0 %2609
        %v2612 = vunpack.c.l.b16 %v2567
        %v2613 = vpack.c.b16 %v2612, %v2612
        %2614 = vrot.lane.b32.xlu0 %v2613, 16
        %v2615 = vpop.permute.xlu0 %2614
        %v2617 = vunpack.c.l.b16 %v2547
        %v2618 = vpack.c.b16 %v2617, %v2617
        %2619 = vrot.lane.b32.xlu0 %v2618, 32
        %v2620 = vpop.permute.xlu0 %2619
        %v2622 = vunpack.c.l.b16 %v2573
        %v2623 = vpack.c.b16 %v2622, %v2622
        %2624 = vrot.lane.b32.xlu0 %v2623, 48
        %v2625 = vpop.permute.xlu0 %2624
        %v2627 = vunpack.c.l.b16 %v2545
        %v2628 = vpack.c.b16 %v2627, %v2627
        %2629 = vrot.lane.b32.xlu0 %v2628, 64
        %v2630 = vpop.permute.xlu0 %2629
        %v2632 = vunpack.c.l.b16 %v2571
        %v2633 = vpack.c.b16 %v2632, %v2632
        %2634 = vrot.lane.b32.xlu0 %v2633, 80
        %v2635 = vpop.permute.xlu0 %2634
        %v2637 = vunpack.c.l.b16 %v2549
        %v2638 = vpack.c.b16 %v2637, %v2637
        %2639 = vrot.lane.b32.xlu0 %v2638, 96
        %v2640 = vpop.permute.xlu0 %2639
        %v2642 = vunpack.c.l.b16 %v2575
        %v2643 = vpack.c.b16 %v2642, %v2642
        %2644 = vrot.lane.b32.xlu0 %v2643, 112
        %v2645 = vpop.permute.xlu0 %2644
        %v2648 = vsel %vm386, %v2489, %v2580
        %v2650 = vsel %vm390, %v2648, %v2585
        %v2652 = vsel %vm393, %v2650, %v2590
        %v2654 = vsel %vm396, %v2652, %v2595
        %v2656 = vsel %vm399, %v2654, %v2600
        %v2658 = vsel %vm402, %v2656, %v2605
        %v2660 = vsel %vm405, %v2658, %v2610
        %v2663 = vsel %vm386, %v2541, %v2615
        %v2665 = vsel %vm390, %v2663, %v2620
        %v2667 = vsel %vm393, %v2665, %v2625
        %v2669 = vsel %vm396, %v2667, %v2630
        %v2671 = vsel %vm399, %v2669, %v2635
        %v2673 = vsel %vm402, %v2671, %v2640
        %v2675 = vsel %vm405, %v2673, %v2645
        %v2676 = vrot.slane %v1773, 6
        %v2677 = vrot.slane %v1788, 6
        %v2678 = vrot.slane %v2348, 4
        %v2679 = vrot.slane %v2363, 4
        %v2682 = vrot.slane %v2660, 2
        %v2683 = vrot.slane %v2675, 2
        %v2685 = vsel %vm1242, %v1214, %v2676
        %v2687 = vsel %vm1242, %v1229, %v2677
        %v2689 = vsel %vm1247, %v2685, %v2678
        %v2691 = vsel %vm1247, %v2687, %v2679
        %v2693 = vsel %vm1252, %v2689, %v2682
        %v2696 = vsel %vm1252, %v2691, %v2683
        %s2698 = scalar_lea.vmem %s1, 12
        %v2699 = vld [vmem:[%s2698] sm:$0xf]
        %v2701 = vsel %vm386, %v2699, 0
        %2703 = vmatpush.bf16.msra.mxu0 0
        %2704 = vmatpush.bf16.msra.mxu0 0
        %2705 = vmatpush.bf16.msra.mxu0 0
        %2706 = vmatpush.bf16.msra.mxu0 0
        %2707 = vmatpush.bf16.msra.mxu0 0
        %2708 = vmatpush.bf16.msra.mxu0 0
        %2709 = vmatpush.bf16.msra.mxu0 0
        %2710 = vmatpush.bf16.msra.mxu0 %v2693
        %2711 = vmatmul.bf16.gmra.mxu0 %v2701
        %v2712 = vpop.f32.mrf.mxu0
        %v2713 = vadd.f32 0.0, %v2712
        %v2714 = vpop.f32.mrf.mxu0
        %2715 = vdwg.mxu0
        %2716 = vmatpush.bf16.msra.mxu0 0
        %2717 = vmatpush.bf16.msra.mxu0 0
        %2718 = vmatpush.bf16.msra.mxu0 0
        %2719 = vmatpush.bf16.msra.mxu0 0
        %2720 = vmatpush.bf16.msra.mxu0 0
        %2721 = vmatpush.bf16.msra.mxu0 0
        %2722 = vmatpush.bf16.msra.mxu0 0
        %2723 = vmatpush.bf16.msra.mxu0 %v2696
        %2724 = vmatmul.bf16.gmra.mxu0 %v2701
        %v2725 = vpop.f32.mrf.mxu0
        %v2726 = vadd.f32 0.0, %v2725
        %v2727 = vpop.f32.mrf.mxu0
        %2728 = vdwg.mxu0
        %s2729 = scalar_lea.vmem %s160, 48 [#allocation2]
        %2730 = vst [vmem:[%s2729] sm:$0xff] %v2713
        %2731 = vst [vmem:[%s2729 + $0x8] sm:$0xff] %v2726
        %v2732 = vadd.f32 %v2713, %v2726
        %2733 = vadd.xlane.f32.xlu0 %v2732
        %v2734 = vpop.xlane.xlu0 %2733
        %v2735 = vadd.f32 %v2425, %v2734
        %v2736 = vmul.f32 %v2713, %v2713
        %v2737 = vmul.f32 %v2726, %v2726
        %v2738 = vadd.f32 %v2736, %v2737
        %2739 = vadd.xlane.f32.xlu0 %v2738
        %v2740 = vpop.xlane.xlu0 %2739
        %v2741 = vadd.f32 %v2431, %v2740
        %v2742 = vld [vmem:[#allocation4] sm:$0x1]
        %v2744 = vlaneseq
        %v2745 = vand.u32 %v2744, 127
        %v2746 = vperm.slane %v2735, %v2745
        %v2748 = vadd.f32 %v2742, %v2746
        %vm2749 = vcmask 57344
        %2750 = vst.msk [vmem:[#allocation4] sm:$0x1] %vm2749, %v2748
        %v2751 = vld [vmem:[#allocation4 + $0x1] sm:$0x1]
        %v2753 = vperm.slane %v2741, %v2745
        %v2755 = vadd.f32 %v2751, %v2753
        %2756 = vst.msk [vmem:[#allocation4 + $0x1] sm:$0x1] %vm2749, %v2755
        %s2757 = sand.u32 %s74, 1
        %s2758 = scalar_lea.sflag [#allocation3], %s2757
        %s2759 = sand.u32 %s74, 1
        %s2760 = smul.addr %s2759, 64
        %s2761 = scalar_lea.vmem [#allocation2], %s2760
        // Predicated region
        $region33: #{tpu_custom_call.1} parent=27 // pred_check
          %p2762 = pneg %p84
        $region34: #{tpu_custom_call.1} parent=27 // pred_check_branch
          %2764 = sbr.rel (%p2762) target = $region36
        $region35: #{tpu_custom_call.1} parent=27 // pred_region
          %2766 = vsyncadd %s2758, 0
          %s2767 = smul.addr %s19, 8
          %s2768 = smul.addr %s2767, 8
          %s2769 = scalar_lea.hbm %s2, %s2768
          %s2770 = sshll.u32 %s2761, 4
          %s2771 = int_to_ptr.vmem [resolvable:$true] %s2770
          %s2772 = sshll.u32 %s2769, 4
          %s2773 = int_to_ptr.hbm [resolvable:$true] %s2772
          %2778 = dma.vmem_to_hbm [thread:$0]  %s2771, 1024, %s2773, %s2758, 256, 256, 16
        $region36: #{tpu_custom_call.1} parent=27 // pred_fallthru
          _
        // Predicated region
        $region37: #{tpu_custom_call.1} parent=27 // pred_check
          %p2779 = pneg %p105
        $region38: #{tpu_custom_call.1} parent=27 // pred_check_branch
          %2781 = sbr.rel (%p2779) target = $region40
        $region39: #{tpu_custom_call.1} parent=27 // pred_region
          %2783 = vsyncadd [#allocation5], 0
          %s2785 = sshll.u32 [#allocation4], 4
          %s2786 = int_to_ptr.vmem [resolvable:$true] %s2785
          %s2787 = sshll.u32 %s3, 4
          %s2788 = int_to_ptr.hbm [resolvable:$true] %s2787
          %2790 = dma.vmem_to_hbm [thread:$0]  %s2786, 32, %s2788, [#allocation5]
        $region40: #{tpu_custom_call.1} parent=27 // pred_fallthru
          _
        // Predicated region
        $region41: #{tpu_custom_call.1} parent=27 // pred_check
          %p2791 = pneg %p105
        $region42: #{tpu_custom_call.1} parent=27 // pred_check_branch
          %2793 = sbr.rel (%p2791) target = $region44
        $region43: #{tpu_custom_call.1} parent=27 // pred_region
          %2795 = dma.done [#allocation5], 32
        $region44: #{tpu_custom_call.1} parent=27 // pred_fallthru
          _
      $region28: #{tpu_custom_call.1} parent=5 // pred_fallthru
        _
      %p2796 = scmp.le.s32.totalorder 2, %s14
      // Predicated region
      $region45: #{tpu_custom_call.1} parent=5 // pred_check
        %p2797 = pneg %p2796
      $region46: #{tpu_custom_call.1} parent=5 // pred_check_branch
        %2799 = sbr.rel (%p2797) target = $region48
      $region47: #{tpu_custom_call.1} parent=5 // pred_region
        %s2800 = ssub.s32 %s14, 2
        // Predicated region
        $region49: #{tpu_custom_call.1} parent=47 // pred_check
          %p2801 = pneg %p90
        $region50: #{tpu_custom_call.1} parent=47 // pred_check_branch
          %2803 = sbr.rel (%p2801) target = $region52
        $region51: #{tpu_custom_call.1} parent=47 // pred_region
          %s2804 = sand.u32 %s75, 1
          %s2805 = scalar_lea.sflag [#allocation3], %s2804
          %s2806 = sand.u32 %s75, 1
          %s2807 = smul.addr %s2806, 64
          %s2808 = scalar_lea.vmem [#allocation2], %s2807
          %2810 = dma.done %s2805, 1024
        $region52: #{tpu_custom_call.1} parent=47 // pred_fallthru
          _
      $region48: #{tpu_custom_call.1} parent=5 // pred_fallthru
        _
    $region6: #{tpu_custom_call.1} parent=1 // loop_footer
      %s18 = sadd.s32 1, %s14
    $region7: #{tpu_custom_call.1} parent=1 // loop_footer_branch
      %13 = sbr.rel target = $region3
    $region8: #{tpu_custom_call.1} parent=1 // loop_exit
      _
    %2811 = vsyncpa [#allocation3], 1
    %s2812 = scalar_lea.sflag [#allocation3], 1
    %2813 = vsyncpa %s2812, 1
    %2814 = vsyncpa [#allocation5], 1

</llo_original>
